<compile_context>
chip_gen: v5e
topology: v5e:2x2
jax: 0.10.0
libtpu: 0.0.40
codegen_flags: <defaults>
</compile_context>

<pallas_src>
import functools
import math

import jax
import jax.numpy as jnp
from jax.experimental import pallas as pl
from jax.experimental.pallas import tpu as pltpu

_VMEM = pl.BlockSpec(memory_space=pltpu.MemorySpace.VMEM)
_SMEM = pl.BlockSpec(memory_space=pltpu.MemorySpace.SMEM)


# ----------------------------- Pallas kernels -----------------------------

def _graph_kernel(tn_ref, a_ref, x_ref, knn_ref, *refs, num_convs, bsz):
    # refs = [w0, b0, ..., w_{L-1}, b_{L-1}, gw1, gb1, gw2, gb2, slab_ref, emb2_ref, g_scr]
    conv_refs = refs[:2 * num_convs]
    gw1, gb1, gw2, gb2 = refs[2 * num_convs:2 * num_convs + 4]
    slab_ref, emb2_ref = refs[2 * num_convs + 4:2 * num_convs + 6]
    g_scr = refs[2 * num_convs + 6]

    a = a_ref[...]                                   # a_norm DMA'd into VMEM exactly once
    n = a.shape[0]

    # ---- DGCNN tanh(GCNConv) stack: running h stays on-chip ----
    h = x_ref[...]
    hs = []
    for i in range(num_convs):
        w = conv_refs[2 * i][...]
        b = conv_refs[2 * i + 1][...]
        h = jnp.tanh(
            jnp.dot(a, jnp.dot(h, w, preferred_element_type=jnp.float32),
                    preferred_element_type=jnp.float32) + b)
        hs.append(h)
    total = sum(hh.shape[1] for hh in hs)
    pad = slab_ref.shape[1] - total
    if pad > 0:
        hs.append(jnp.zeros((n, pad), jnp.float32))
    slab_ref[...] = jnp.concatenate(hs, axis=1)      # single lane-dense (128-wide) store

    # ---- GCN branch: GCNConv -> ReLU -> GCNConv, intermediate never leaves VMEM ----
    g = jnp.dot(knn_ref[...], gw1[...], preferred_element_type=jnp.float32)
    g = jnp.maximum(jnp.dot(a, g, preferred_element_type=jnp.float32) + gb1[...], 0.0)
    g = jnp.dot(g, gw2[...], preferred_element_type=jnp.float32)
    g = jnp.dot(a, g, preferred_element_type=jnp.float32) + gb2[...]
    g_scr[...] = g

    # ---- target-node gather + even/odd pair-sum on-chip: only [bsz, out_ch] written ----
    rows = []
    for i in range(bsz):
        t0 = tn_ref[2 * i]
        t1 = tn_ref[2 * i + 1]
        rows.append(g_scr[pl.ds(t0, 1), :] + g_scr[pl.ds(t1, 1), :])
    emb2_ref[...] = jnp.concatenate(rows, axis=0)


def graph_branches(a_norm, x, knn_x, convs, gcn, target_nodes, *, bsz, slab_width):
    n = x.shape[0]
    out_ch = gcn["w2"].shape[1]
    num_convs = len(convs)
    flat = []
    for (w, b) in convs:
        flat += [w, b]
    total = sum(int(w.shape[1]) for (w, _) in convs)

    flops = 0
    c_in = x.shape[1]
    for (w, _) in convs:
        c_out_i = int(w.shape[1])
        flops += 2 * n * c_in * c_out_i + 2 * n * n * c_out_i
        c_in = c_out_i
    c_mid = int(gcn["w1"].shape[1])
    flops += 2 * n * (int(knn_x.shape[1]) * c_mid + n * c_mid + c_mid * out_ch + n * out_ch)
    bytes_accessed = 4 * (n * n + int(x.size) + int(knn_x.size)
                          + sum(int(p.size) for p in flat)
                          + sum(int(gcn[kk].size) for kk in ("w1", "b1", "w2", "b2"))
                          + n * slab_width + bsz * out_ch + int(target_nodes.size))

    kernel = functools.partial(_graph_kernel, num_convs=num_convs, bsz=bsz)
    return pl.pallas_call(
        kernel,
        out_shape=(jax.ShapeDtypeStruct((n, slab_width), jnp.float32),
                   jax.ShapeDtypeStruct((bsz, out_ch), jnp.float32)),
        in_specs=[_SMEM] + [_VMEM] * (3 + len(flat) + 4),
        out_specs=(_VMEM, _VMEM),
        scratch_shapes=[pltpu.VMEM((n, out_ch), jnp.float32)],
        cost_estimate=pl.CostEstimate(flops=flops, transcendentals=n * total,
                                      bytes_accessed=bytes_accessed),
    )(target_nodes, a_norm, x, knn_x, *flat,
      gcn["w1"], gcn["b1"], gcn["w2"], gcn["b2"])


def _readout_fusion_kernel(x2_ref, c1w_ref, c1b_ref, c2w_ref, c2b_ref,
                           l1w_ref, l1b_ref, e2_ref,
                           attw_ref, attb_ref, qw_ref, qb_ref, hw_ref, hb_ref,
                           o_ref, *, bsz, half, kw):
    # Fused: Conv1d(1,C1,k=D,s=D) + ReLU + MaxPool1d(2,2) + Conv1d(C1,C2,5,1) + ReLU
    #        + lin1 + attention fusion + the 3 output heads.
    c1 = c1w_ref.shape[1]
    c2 = c2b_ref.shape[1]
    l3 = half - kw + 1
    nwin = bsz * half

    # conv1 (kernel==stride -> per-window matmul) on the [even-windows ; odd-windows] slab.
    y = jnp.dot(x2_ref[...], c1w_ref[...], preferred_element_type=jnp.float32) + c1b_ref[...]
    y = jnp.maximum(y, 0.0)                               # relu-then-maxpool == maxpool-then-relu
    pooled = jnp.maximum(y[:nwin, :], y[nwin:, :])        # [B*half, C1]  (MaxPool1d(2,2))

    # conv2 (k=kw, s=1) as kw shifted slab matmuls over ALL batches at once.
    big_l = nwin - kw + 1
    c2w = c2w_ref[...]                                    # [kw*C1, C2], rows ordered (dt, c1)
    acc = jnp.zeros((big_l, c2), jnp.float32)
    for dt in range(kw):
        acc = acc + jnp.dot(pooled[dt:dt + big_l, :], c2w[dt * c1:(dt + 1) * c1, :],
                            preferred_element_type=jnp.float32)
    y2 = jnp.maximum(acc + c2b_ref[...], 0.0)             # [B*half - kw + 1, C2]

    # flatten the l3 valid windows per batch (lane-concat, no reshape) -> ONE lin1 matmul.
    flat = jnp.concatenate(
        [jnp.concatenate([y2[b * half + t: b * half + t + 1, :] for t in range(l3)], axis=1)
         for b in range(bsz)], axis=0)                    # [B, l3*C2]
    e1 = jnp.dot(flat, l1w_ref[...], preferred_element_type=jnp.float32) + l1b_ref[...]
    e2 = e2_ref[...]

    # attention fusion: att_i = query(tanh(att_lin_i(emb_i))) via block-diagonal weights.
    ecat = jnp.concatenate([e1, e2], axis=1)              # [B, 2*out]
    t = jnp.tanh(jnp.dot(ecat, attw_ref[...], preferred_element_type=jnp.float32)
                 + attb_ref[...])                         # [B, 2*nh]
    att = jnp.dot(t, qw_ref[...], preferred_element_type=jnp.float32) + qb_ref[...]  # [B, 2]
    # softmax over two logits == sigmoid(att1 - att2): numerically stable, one exp, one recip.
    w1 = 1.0 / (1.0 + jnp.exp(att[:, 1:2] - att[:, 0:1]))
    xf = w1 * e1 + (1.0 - w1) * e2
    # three heads as one matmul on row-stacked [e1; e2; xf] against [lin1|lin2|lin3].
    stacked = jnp.concatenate([e1, e2, xf], axis=0)       # [3B, out]
    heads = jnp.dot(stacked, hw_ref[...], preferred_element_type=jnp.float32) + hb_ref[...]
    o_ref[...] = jnp.concatenate(
        [heads[0:bsz, 0:1], heads[bsz:2 * bsz, 1:2], heads[2 * bsz:3 * bsz, 2:3]], axis=1)


def readout_fusion(x2, emb_2, packed, *, bsz, half, kw):
    out_ch = packed["hw"].shape[0]
    c1 = int(packed["conv1_w"].shape[1])
    c2 = int(packed["conv2_b"].shape[1])
    l3 = half - kw + 1
    nh2 = int(packed["attw"].shape[1])
    flops = (2 * int(x2.shape[0]) * int(x2.shape[1]) * c1
             + 2 * kw * (bsz * half) * c1 * c2
             + 2 * bsz * (l3 * c2) * out_ch
             + 2 * bsz * (2 * out_ch) * nh2 + 2 * bsz * nh2 * 2
             + 2 * 3 * bsz * out_ch * 3)
    w_names = ("conv1_w", "conv1_b", "conv2_w", "conv2_b", "lin1_w", "lin1_b",
               "attw", "attb", "qw", "qb", "hw", "hb")
    bytes_accessed = 4 * (int(x2.size) + int(emb_2.size)
                          + sum(int(packed[nm].size) for nm in w_names) + bsz * 3)
    kernel = functools.partial(_readout_fusion_kernel, bsz=bsz, half=half, kw=kw)
    return pl.pallas_call(
        kernel,
        out_shape=jax.ShapeDtypeStruct((bsz, 3), jnp.float32),
        in_specs=[_VMEM] * 14,
        out_specs=_VMEM,
        cost_estimate=pl.CostEstimate(flops=flops, transcendentals=bsz * (nh2 + 1),
                                      bytes_accessed=bytes_accessed),
    )(x2, packed["conv1_w"], packed["conv1_b"], packed["conv2_w"], packed["conv2_b"],
      packed["lin1_w"], packed["lin1_b"], emb_2,
      packed["attw"], packed["attb"], packed["qw"], packed["qb"],
      packed["hw"], packed["hb"])


# ------------------------------- JAX glue ---------------------------------

def normalized_adjacency(edge_index, num_nodes):
    # NOTE: assumes edge_index is deduplicated (duplicates would be double-counted,
    # unlike torch_geometric's GCNConv which operates on the raw edge list).
    src = edge_index[0]
    dst = edge_index[1]
    a = jnp.zeros((num_nodes, num_nodes), jnp.float32)
    a = a.at[dst, src].add(1.0)
    a = a + jnp.eye(num_nodes, dtype=jnp.float32)          # self-loops
    deg = jnp.sum(a, axis=1)
    d_inv_sqrt = 1.0 / jnp.sqrt(deg)
    return a * d_inv_sqrt[:, None] * d_inv_sqrt[None, :]


def global_sort_pool(h, graph_sizes, k, sort_col):
    # TODO(synk): the data-dependent top-k / ragged per-graph padding has no clean Pallas/TPU
    # equivalent; kept in JAX (now a single lax.top_k + one batched gather, no full argsort).
    num_graphs = len(graph_sizes)
    d = h.shape[1]
    n_pad = max(max(graph_sizes), k)
    neg = jnp.float32(-3.0e38)                             # below any real feature value
    rows, off = [], 0
    for n in graph_sizes:
        g = h[off:off + n]
        if n < n_pad:
            g = jnp.concatenate([g, jnp.full((n_pad - n, d), neg, h.dtype)], axis=0)
        rows.append(g)
        off += n
    dense = jnp.stack(rows, axis=0)                        # [B, n_pad, D]
    keys = dense[:, :, sort_col]                           # sort by the true last DGCNN channel
    _, topk = jax.lax.top_k(keys, k)                       # descending, O(n) vs argsort
    dense = jnp.take_along_axis(dense, topk[:, :, None], axis=1)   # [B, k, D]
    sizes = jnp.array(graph_sizes, jnp.int32)[:, None]
    valid = jnp.arange(k, dtype=jnp.int32)[None, :] < sizes        # index-based padding mask
    return jnp.where(valid[:, :, None], dense, 0.0)


def pack_params(params, *, k, kw=5):
    """One-time (outside the traced forward) weight repacking."""
    dp = params["dgcnn"]
    total = sum(int(w.shape[1]) for (w, _) in dp["convs"])
    slab_width = ((total + 127) // 128) * 128              # lane-dense slab width
    c1 = int(dp["conv1_w"].shape[1])
    c2 = int(dp["conv2_b"].shape[1])
    half = k // 2
    l3 = half - kw + 1
    out_ch = int(dp["lin1_w"].shape[1])

    # conv1 consumes the 128-lane-padded slab channels: pad its rows with zeros.
    conv1_w = jnp.concatenate(
        [dp["conv1_w"], jnp.zeros((slab_width - total, c1), jnp.float32)], axis=0)
    # conv2: row c1*kw+dt -> dt*c1+c1 ; lin1: row c2*l3+t -> t*c2+c2 (torch flatten order).
    conv2_w = dp["conv2_w"].reshape(c1, kw, c2).transpose(1, 0, 2).reshape(kw * c1, c2)
    lin1_w = dp["lin1_w"].reshape(c2, l3, out_ch).transpose(1, 0, 2).reshape(l3 * c2, out_ch)

    bp = params["bsal"]
    nh = int(bp["att1_w"].shape[1])
    z_att = jnp.zeros((out_ch, nh), jnp.float32)
    attw = jnp.concatenate(
        [jnp.concatenate([bp["att1_w"], z_att], axis=1),
         jnp.concatenate([z_att, bp["att2_w"]], axis=1)], axis=0)               # [2C, 2*nh]
    attb = jnp.concatenate([bp["att1_b"], bp["att2_b"]], axis=1)                # [1, 2*nh]
    z_q = jnp.zeros((nh, 1), jnp.float32)
    qw = jnp.concatenate(
        [jnp.concatenate([bp["q_w"], z_q], axis=1),
         jnp.concatenate([z_q, bp["q_w"]], axis=1)], axis=0)                    # [2*nh, 2]
    qb = jnp.concatenate([bp["q_b"], bp["q_b"]], axis=1)                        # [1, 2]
    hw = jnp.concatenate([bp["lin1_w"], bp["lin2_w"], bp["lin3_w"]], axis=1)    # [C, 3]
    hb = jnp.concatenate([bp["lin1_b"], bp["lin2_b"], bp["lin3_b"]], axis=1)    # [1, 3]

    return {
        "convs": dp["convs"],
        "gcn": params["gcn"],
        "conv1_w": conv1_w, "conv1_b": dp["conv1_b"],
        "conv2_w": conv2_w, "conv2_b": dp["conv2_b"],
        "lin1_w": lin1_w, "lin1_b": dp["lin1_b"],
        "attw": attw, "attb": attb, "qw": qw, "qb": qb, "hw": hw, "hb": hb,
    }


def bsal3_forward(packed, x, knn_x, a_norm, target_nodes, graph_sizes, k):
    bsz = len(graph_sizes)
    assert k % 2 == 0, "even/odd window split (MaxPool1d(2,2)) requires even k"
    assert target_nodes.shape[0] == 2 * bsz, "target_nodes must hold 2 nodes per graph"
    convs = packed["convs"]
    total = sum(int(w.shape[1]) for (w, _) in convs)
    slab_width = int(packed["conv1_w"].shape[0])
    kw = 5
    half = k // 2

    # ---- single kernel: DGCNN stack slab + GCN branch + target gather/pair-sum ----
    slab, emb_2 = graph_branches(a_norm, x, knn_x, convs, packed["gcn"], target_nodes,
                                 bsz=bsz, slab_width=slab_width)

    # ---- sort pool (JAX glue) on the padded slab, sorting by the real last channel ----
    dense = global_sort_pool(slab, graph_sizes, k, sort_col=total - 1)   # [B, k, slab_width]
    d = dense.shape[2]
    x_even = dense[:, 0:2 * half:2, :].reshape(bsz * half, d)
    x_odd = dense[:, 1:2 * half:2, :].reshape(bsz * half, d)
    x2 = jnp.concatenate([x_even, x_odd], axis=0)          # [B*k, slab_width] conv1 slab

    # ---- single kernel: conv1/pool/conv2/lin1 readout + attention fusion + heads ----
    out = readout_fusion(x2, emb_2, packed, bsz=bsz, half=half, kw=kw)   # [B, 3]
    return out[:, 0:1], out[:, 1:2], out[:, 2:3]


def init_linear(key, fan_in, fan_out):
    kw, kb = jax.random.split(key)
    bound = 1.0 / math.sqrt(fan_in)
    w = jax.random.uniform(kw, (fan_in, fan_out), jnp.float32, -bound, bound)
    b = jax.random.uniform(kb, (1, fan_out), jnp.float32, -bound, bound)
    return w, b


if __name__ == "__main__":
    key = jax.random.PRNGKey(0)

    # ---- config (small shapes consistent with the module) ----
    in_channels, hidden_channels, out_channels, num_layers = 4, 32, 8, 3
    graph_sizes = [12, 16]                 # two graphs in the batch
    num_nodes = sum(graph_sizes)           # 28
    train_num_nodes = [12, 16, 20]         # synthetic "train_dataset" node counts
    sorted_nodes = sorted(train_num_nodes)
    k = sorted_nodes[int(math.ceil(0.6 * len(sorted_nodes))) - 1]
    k = max(10, int(k))                    # -> 16
    total_latent_dim = hidden_channels * num_layers + 1     # 97
    c1_ch, c2_ch, conv2_kw = 16, 32, 5
    dense_dim = int((k - 2) / 2 + 1)
    dense_dim = (dense_dim - conv2_kw + 1) * c2_ch          # 128

    # ---- deterministic parameters ----
    keys = jax.random.split(key, 32)
    conv_dims = [(in_channels, hidden_channels)] + \
                [(hidden_channels, hidden_channels)] * (num_layers - 1) + \
                [(hidden_channels, 1)]
    dgcnn_convs = [init_linear(keys[i], di, do) for i, (di, do) in enumerate(conv_dims)]
    conv1_w, conv1_b = init_linear(keys[10], total_latent_dim, c1_ch)
    conv2_w, conv2_b = init_linear(keys[11], c1_ch * conv2_kw, c2_ch)
    dlin1_w, dlin1_b = init_linear(keys[12], dense_dim, out_channels)
    gcn_w1, gcn_b1 = init_linear(keys[13], 32, 64)
    gcn_w2, gcn_b2 = init_linear(keys[14], 64, out_channels)
    att1_w, att1_b = init_linear(keys[15], out_channels, 16)
    att2_w, att2_b = init_linear(keys[16], out_channels, 16)
    q_w, q_b = init_linear(keys[17], 16, 1)
    blin1_w, blin1_b = init_linear(keys[18], out_channels, 1)
    blin2_w, blin2_b = init_linear(keys[19], out_channels, 1)
    blin3_w, blin3_b = init_linear(keys[20], out_channels, 1)

    params = {
        "dgcnn": {"convs": dgcnn_convs,
                  "conv1_w": conv1_w, "conv1_b": conv1_b,
                  "conv2_w": conv2_w, "conv2_b": conv2_b,
                  "lin1_w": dlin1_w, "lin1_b": dlin1_b},
        "gcn": {"w1": gcn_w1, "b1": gcn_b1, "w2": gcn_w2, "b2": gcn_b2},
        "bsal": {"att1_w": att1_w, "att1_b": att1_b,
                 "att2_w": att2_w, "att2_b": att2_b,
                 "q_w": q_w, "q_b": q_b,
                 "lin1_w": blin1_w, "lin1_b": blin1_b,
                 "lin2_w": blin2_w, "lin2_b": blin2_b,
                 "lin3_w": blin3_w, "lin3_b": blin3_b},
    }
    packed = pack_params(params, k=k, kw=conv2_kw)   # weight repacking hoisted out of forward

    # ---- deterministic inputs ----
    kx, kknn = jax.random.split(keys[21])
    x = jax.random.normal(kx, (num_nodes, in_channels), jnp.float32)
    knn_x = jax.random.normal(kknn, (num_nodes, 32), jnp.float32)

    edges, off = [], 0
    for n in graph_sizes:                   # ring graph per component (undirected, deduplicated)
        for i in range(n):
            j = (i + 1) % n
            edges.append((off + i, off + j))
            edges.append((off + j, off + i))
        off += n
    edge_index = jnp.array(edges, dtype=jnp.int32).T        # [2, E]
    a_norm = normalized_adjacency(edge_index, num_nodes)    # dense D^-1/2 (A+I) D^-1/2
    target_nodes = jnp.array([0, 12, 5, 20], dtype=jnp.int32)

    fwd = jax.jit(lambda p, xx, kk, aa, tn: bsal3_forward(
        p, xx, kk, aa, tn, tuple(graph_sizes), k))
    out1, out2, out3 = fwd(packed, x, knn_x, a_norm, target_nodes)
    jax.block_until_ready((out1, out2, out3))
    assert out1.shape == (len(graph_sizes), 1)
    assert out2.shape == (len(graph_sizes), 1)
    assert out3.shape == (len(graph_sizes), 1)
    print("KERNEL_OK")
</pallas_src>

<mosaic_0001>
module attributes {stable_mosaic.version = 11 : i64} {
  func.func @_graph_kernel(%arg0: memref<4xi32, #tpu.memory_space<smem>>, %arg1: memref<28x28xf32, #tpu.memory_space<vmem>>, %arg2: memref<28x4xf32, #tpu.memory_space<vmem>>, %arg3: memref<28x32xf32, #tpu.memory_space<vmem>>, %arg4: memref<4x32xf32, #tpu.memory_space<vmem>>, %arg5: memref<1x32xf32, #tpu.memory_space<vmem>>, %arg6: memref<32x32xf32, #tpu.memory_space<vmem>>, %arg7: memref<1x32xf32, #tpu.memory_space<vmem>>, %arg8: memref<32x32xf32, #tpu.memory_space<vmem>>, %arg9: memref<1x32xf32, #tpu.memory_space<vmem>>, %arg10: memref<32x1xf32, #tpu.memory_space<vmem>>, %arg11: memref<1x1xf32, #tpu.memory_space<vmem>>, %arg12: memref<32x64xf32, #tpu.memory_space<vmem>>, %arg13: memref<1x64xf32, #tpu.memory_space<vmem>>, %arg14: memref<64x8xf32, #tpu.memory_space<vmem>>, %arg15: memref<1x8xf32, #tpu.memory_space<vmem>>, %arg16: memref<28x128xf32, #tpu.memory_space<vmem>>, %arg17: memref<2x8xf32, #tpu.memory_space<vmem>>, %arg18: memref<28x8xf32, #tpu.memory_space<vmem>>) attributes {dimension_semantics = [], scalar_prefetch = 0 : i64, scratch_operands = 1 : i64, tpu.core_type = #tpu.core_type<tc>} {
    %c0 = arith.constant 0 : index
    %c0_0 = arith.constant 0 : index
    %0 = vector.load %arg1[%c0, %c0_0] : memref<28x28xf32, #tpu.memory_space<vmem>>, vector<28x28xf32>
    %c0_1 = arith.constant 0 : index
    %c0_2 = arith.constant 0 : index
    %1 = vector.load %arg2[%c0_1, %c0_2] : memref<28x4xf32, #tpu.memory_space<vmem>>, vector<28x4xf32>
    %c0_3 = arith.constant 0 : index
    %c0_4 = arith.constant 0 : index
    %2 = vector.load %arg4[%c0_3, %c0_4] : memref<4x32xf32, #tpu.memory_space<vmem>>, vector<4x32xf32>
    %c0_5 = arith.constant 0 : index
    %c0_6 = arith.constant 0 : index
    %3 = vector.load %arg5[%c0_5, %c0_6] : memref<1x32xf32, #tpu.memory_space<vmem>>, vector<1x32xf32>
    %cst = arith.constant dense<0.000000e+00> : vector<28x32xf32>
    %4 = tpu.matmul %1, %2, %cst {dimension_numbers = #tpu.dot_dimension_numbers<[1], [0], [0], [1], [0, 0, 1, 1], [], []>} : vector<28x4xf32>, vector<4x32xf32>, vector<28x32xf32> -> vector<28x32xf32>
    %cst_7 = arith.constant dense<0.000000e+00> : vector<28x32xf32>
    %5 = tpu.matmul %0, %4, %cst_7 {dimension_numbers = #tpu.dot_dimension_numbers<[1], [0], [0], [1], [0, 0, 1, 1], [], []>} : vector<28x28xf32>, vector<28x32xf32>, vector<28x32xf32> -> vector<28x32xf32>
    %6 = vector.broadcast %3 : vector<1x32xf32> to vector<28x32xf32>
    %7 = arith.addf %5, %6 : vector<28x32xf32>
    %8 = math.tanh %7 : vector<28x32xf32>
    %c0_8 = arith.constant 0 : index
    %c0_9 = arith.constant 0 : index
    %9 = vector.load %arg6[%c0_8, %c0_9] : memref<32x32xf32, #tpu.memory_space<vmem>>, vector<32x32xf32>
    %c0_10 = arith.constant 0 : index
    %c0_11 = arith.constant 0 : index
    %10 = vector.load %arg7[%c0_10, %c0_11] : memref<1x32xf32, #tpu.memory_space<vmem>>, vector<1x32xf32>
    %cst_12 = arith.constant dense<0.000000e+00> : vector<28x32xf32>
    %11 = tpu.matmul %8, %9, %cst_12 {dimension_numbers = #tpu.dot_dimension_numbers<[1], [0], [0], [1], [0, 0, 1, 1], [], []>} : vector<28x32xf32>, vector<32x32xf32>, vector<28x32xf32> -> vector<28x32xf32>
    %cst_13 = arith.constant dense<0.000000e+00> : vector<28x32xf32>
    %12 = tpu.matmul %0, %11, %cst_13 {dimension_numbers = #tpu.dot_dimension_numbers<[1], [0], [0], [1], [0, 0, 1, 1], [], []>} : vector<28x28xf32>, vector<28x32xf32>, vector<28x32xf32> -> vector<28x32xf32>
    %13 = vector.broadcast %10 : vector<1x32xf32> to vector<28x32xf32>
    %14 = arith.addf %12, %13 : vector<28x32xf32>
    %15 = math.tanh %14 : vector<28x32xf32>
    %c0_14 = arith.constant 0 : index
    %c0_15 = arith.constant 0 : index
    %16 = vector.load %arg8[%c0_14, %c0_15] : memref<32x32xf32, #tpu.memory_space<vmem>>, vector<32x32xf32>
    %c0_16 = arith.constant 0 : index
    %c0_17 = arith.constant 0 : index
    %17 = vector.load %arg9[%c0_16, %c0_17] : memref<1x32xf32, #tpu.memory_space<vmem>>, vector<1x32xf32>
    %cst_18 = arith.constant dense<0.000000e+00> : vector<28x32xf32>
    %18 = tpu.matmul %15, %16, %cst_18 {dimension_numbers = #tpu.dot_dimension_numbers<[1], [0], [0], [1], [0, 0, 1, 1], [], []>} : vector<28x32xf32>, vector<32x32xf32>, vector<28x32xf32> -> vector<28x32xf32>
    %cst_19 = arith.constant dense<0.000000e+00> : vector<28x32xf32>
    %19 = tpu.matmul %0, %18, %cst_19 {dimension_numbers = #tpu.dot_dimension_numbers<[1], [0], [0], [1], [0, 0, 1, 1], [], []>} : vector<28x28xf32>, vector<28x32xf32>, vector<28x32xf32> -> vector<28x32xf32>
    %20 = vector.broadcast %17 : vector<1x32xf32> to vector<28x32xf32>
    %21 = arith.addf %19, %20 : vector<28x32xf32>
    %22 = math.tanh %21 : vector<28x32xf32>
    %c0_20 = arith.constant 0 : index
    %c0_21 = arith.constant 0 : index
    %23 = vector.load %arg10[%c0_20, %c0_21] : memref<32x1xf32, #tpu.memory_space<vmem>>, vector<32x1xf32>
    %c0_22 = arith.constant 0 : index
    %c0_23 = arith.constant 0 : index
    %24 = vector.load %arg11[%c0_22, %c0_23] : memref<1x1xf32, #tpu.memory_space<vmem>>, vector<1x1xf32>
    %cst_24 = arith.constant dense<0.000000e+00> : vector<28x1xf32>
    %25 = tpu.matmul %22, %23, %cst_24 {dimension_numbers = #tpu.dot_dimension_numbers<[1], [0], [0], [1], [0, 0, 1, 1], [], []>} : vector<28x32xf32>, vector<32x1xf32>, vector<28x1xf32> -> vector<28x1xf32>
    %cst_25 = arith.constant dense<0.000000e+00> : vector<28x1xf32>
    %26 = tpu.matmul %0, %25, %cst_25 {dimension_numbers = #tpu.dot_dimension_numbers<[1], [0], [0], [1], [0, 0, 1, 1], [], []>} : vector<28x28xf32>, vector<28x1xf32>, vector<28x1xf32> -> vector<28x1xf32>
    %27 = vector.broadcast %24 : vector<1x1xf32> to vector<28x1xf32>
    %28 = arith.addf %26, %27 : vector<28x1xf32>
    %29 = math.tanh %28 : vector<28x1xf32>
    %cst_26 = arith.constant 0.000000e+00 : f32
    %30 = vector.broadcast %cst_26 : f32 to vector<28x31xf32>
    %31 = tpu.concatenate %8, %15, %22, %29, %30 in 1 : vector<28x32xf32>, vector<28x32xf32>, vector<28x32xf32>, vector<28x1xf32>, vector<28x31xf32> -> vector<28x128xf32>
    %c0_27 = arith.constant 0 : index
    %c0_28 = arith.constant 0 : index
    %32 = vector.load %arg16[%c0_27, %c0_28] : memref<28x128xf32, #tpu.memory_space<vmem>>, vector<28x128xf32>
    tpu.vector_store %arg16[%c0_27, %c0_28], %31 {strides = array<i32>} : memref<28x128xf32, #tpu.memory_space<vmem>>, vector<28x128xf32>,
    %c0_29 = arith.constant 0 : index
    %c0_30 = arith.constant 0 : index
    %33 = vector.load %arg3[%c0_29, %c0_30] : memref<28x32xf32, #tpu.memory_space<vmem>>, vector<28x32xf32>
    %c0_31 = arith.constant 0 : index
    %c0_32 = arith.constant 0 : index
    %34 = vector.load %arg12[%c0_31, %c0_32] : memref<32x64xf32, #tpu.memory_space<vmem>>, vector<32x64xf32>
    %cst_33 = arith.constant dense<0.000000e+00> : vector<28x64xf32>
    %35 = tpu.matmul %33, %34, %cst_33 {dimension_numbers = #tpu.dot_dimension_numbers<[1], [0], [0], [1], [0, 0, 1, 1], [], []>} : vector<28x32xf32>, vector<32x64xf32>, vector<28x64xf32> -> vector<28x64xf32>
    %cst_34 = arith.constant dense<0.000000e+00> : vector<28x64xf32>
    %36 = tpu.matmul %0, %35, %cst_34 {dimension_numbers = #tpu.dot_dimension_numbers<[1], [0], [0], [1], [0, 0, 1, 1], [], []>} : vector<28x28xf32>, vector<28x64xf32>, vector<28x64xf32> -> vector<28x64xf32>
    %c0_35 = arith.constant 0 : index
    %c0_36 = arith.constant 0 : index
    %37 = vector.load %arg13[%c0_35, %c0_36] : memref<1x64xf32, #tpu.memory_space<vmem>>, vector<1x64xf32>
    %38 = vector.broadcast %37 : vector<1x64xf32> to vector<28x64xf32>
    %39 = arith.addf %36, %38 : vector<28x64xf32>
    %cst_37 = arith.constant 0.000000e+00 : f32
    %40 = vector.broadcast %cst_37 : f32 to vector<28x64xf32>
    %41 = arith.maximumf %39, %40 : vector<28x64xf32>
    %c0_38 = arith.constant 0 : index
    %c0_39 = arith.constant 0 : index
    %42 = vector.load %arg14[%c0_38, %c0_39] : memref<64x8xf32, #tpu.memory_space<vmem>>, vector<64x8xf32>
    %cst_40 = arith.constant dense<0.000000e+00> : vector<28x8xf32>
    %43 = tpu.matmul %41, %42, %cst_40 {dimension_numbers = #tpu.dot_dimension_numbers<[1], [0], [0], [1], [0, 0, 1, 1], [], []>} : vector<28x64xf32>, vector<64x8xf32>, vector<28x8xf32> -> vector<28x8xf32>
    %cst_41 = arith.constant dense<0.000000e+00> : vector<28x8xf32>
    %44 = tpu.matmul %0, %43, %cst_41 {dimension_numbers = #tpu.dot_dimension_numbers<[1], [0], [0], [1], [0, 0, 1, 1], [], []>} : vector<28x28xf32>, vector<28x8xf32>, vector<28x8xf32> -> vector<28x8xf32>
    %c0_42 = arith.constant 0 : index
    %c0_43 = arith.constant 0 : index
    %45 = vector.load %arg15[%c0_42, %c0_43] : memref<1x8xf32, #tpu.memory_space<vmem>>, vector<1x8xf32>
    %46 = vector.broadcast %45 : vector<1x8xf32> to vector<28x8xf32>
    %47 = arith.addf %44, %46 : vector<28x8xf32>
    %c0_44 = arith.constant 0 : index
    %c0_45 = arith.constant 0 : index
    %48 = vector.load %arg18[%c0_44, %c0_45] : memref<28x8xf32, #tpu.memory_space<vmem>>, vector<28x8xf32>
    tpu.vector_store %arg18[%c0_44, %c0_45], %47 {strides = array<i32>} : memref<28x8xf32, #tpu.memory_space<vmem>>, vector<28x8xf32>,
    %c0_46 = arith.constant 0 : index
    %49 = memref.load %arg0[%c0_46] : memref<4xi32, #tpu.memory_space<smem>>
    %c1 = arith.constant 1 : index
    %50 = memref.load %arg0[%c1] : memref<4xi32, #tpu.memory_space<smem>>
    %51 = arith.index_cast %49 : i32 to index
    %c0_47 = arith.constant 0 : index
    %52 = vector.load %arg18[%51, %c0_47] : memref<28x8xf32, #tpu.memory_space<vmem>>, vector<1x8xf32>
    %53 = arith.index_cast %50 : i32 to index
    %c0_48 = arith.constant 0 : index
    %54 = vector.load %arg18[%53, %c0_48] : memref<28x8xf32, #tpu.memory_space<vmem>>, vector<1x8xf32>
    %55 = arith.addf %52, %54 : vector<1x8xf32>
    %c2 = arith.constant 2 : index
    %56 = memref.load %arg0[%c2] : memref<4xi32, #tpu.memory_space<smem>>
    %c3 = arith.constant 3 : index
    %57 = memref.load %arg0[%c3] : memref<4xi32, #tpu.memory_space<smem>>
    %58 = arith.index_cast %56 : i32 to index
    %c0_49 = arith.constant 0 : index
    %59 = vector.load %arg18[%58, %c0_49] : memref<28x8xf32, #tpu.memory_space<vmem>>, vector<1x8xf32>
    %60 = arith.index_cast %57 : i32 to index
    %c0_50 = arith.constant 0 : index
    %61 = vector.load %arg18[%60, %c0_50] : memref<28x8xf32, #tpu.memory_space<vmem>>, vector<1x8xf32>
    %62 = arith.addf %59, %61 : vector<1x8xf32>
    %63 = tpu.concatenate %55, %62 in 0 : vector<1x8xf32>, vector<1x8xf32> -> vector<2x8xf32>
    %c0_51 = arith.constant 0 : index
    %c0_52 = arith.constant 0 : index
    %64 = vector.load %arg17[%c0_51, %c0_52] : memref<2x8xf32, #tpu.memory_space<vmem>>, vector<2x8xf32>
    tpu.vector_store %arg17[%c0_51, %c0_52], %63 {strides = array<i32>} : memref<2x8xf32, #tpu.memory_space<vmem>>, vector<2x8xf32>,
    return
  }
}

module attributes {stable_mosaic.version = 11 : i64} {
  func.func @_readout_fusion_kernel(%arg0: memref<32x128xf32, #tpu.memory_space<vmem>>, %arg1: memref<128x16xf32, #tpu.memory_space<vmem>>, %arg2: memref<1x16xf32, #tpu.memory_space<vmem>>, %arg3: memref<80x32xf32, #tpu.memory_space<vmem>>, %arg4: memref<1x32xf32, #tpu.memory_space<vmem>>, %arg5: memref<128x8xf32, #tpu.memory_space<vmem>>, %arg6: memref<1x8xf32, #tpu.memory_space<vmem>>, %arg7: memref<2x8xf32, #tpu.memory_space<vmem>>, %arg8: memref<16x32xf32, #tpu.memory_space<vmem>>, %arg9: memref<1x32xf32, #tpu.memory_space<vmem>>, %arg10: memref<32x2xf32, #tpu.memory_space<vmem>>, %arg11: memref<1x2xf32, #tpu.memory_space<vmem>>, %arg12: memref<8x3xf32, #tpu.memory_space<vmem>>, %arg13: memref<1x3xf32, #tpu.memory_space<vmem>>, %arg14: memref<2x3xf32, #tpu.memory_space<vmem>>) attributes {dimension_semantics = [], scalar_prefetch = 0 : i64, scratch_operands = 0 : i64, tpu.core_type = #tpu.core_type<tc>} {
    %c0 = arith.constant 0 : index
    %c0_0 = arith.constant 0 : index
    %0 = vector.load %arg0[%c0, %c0_0] : memref<32x128xf32, #tpu.memory_space<vmem>>, vector<32x128xf32>
    %c0_1 = arith.constant 0 : index
    %c0_2 = arith.constant 0 : index
    %1 = vector.load %arg1[%c0_1, %c0_2] : memref<128x16xf32, #tpu.memory_space<vmem>>, vector<128x16xf32>
    %cst = arith.constant dense<0.000000e+00> : vector<32x16xf32>
    %2 = tpu.matmul %0, %1, %cst {dimension_numbers = #tpu.dot_dimension_numbers<[1], [0], [0], [1], [0, 0, 1, 1], [], []>} : vector<32x128xf32>, vector<128x16xf32>, vector<32x16xf32> -> vector<32x16xf32>
    %c0_3 = arith.constant 0 : index
    %c0_4 = arith.constant 0 : index
    %3 = vector.load %arg2[%c0_3, %c0_4] : memref<1x16xf32, #tpu.memory_space<vmem>>, vector<1x16xf32>
    %4 = vector.broadcast %3 : vector<1x16xf32> to vector<32x16xf32>
    %5 = arith.addf %2, %4 : vector<32x16xf32>
    %cst_5 = arith.constant 0.000000e+00 : f32
    %6 = vector.broadcast %cst_5 : f32 to vector<32x16xf32>
    %7 = arith.maximumf %5, %6 : vector<32x16xf32>
    %8 = vector.extract_strided_slice %7 {offsets = [0, 0], sizes = [16, 16], strides = [1, 1]} : vector<32x16xf32> to vector<16x16xf32>
    %9 = vector.extract_strided_slice %7 {offsets = [16, 0], sizes = [16, 16], strides = [1, 1]} : vector<32x16xf32> to vector<16x16xf32>
    %10 = arith.maximumf %8, %9 : vector<16x16xf32>
    %c0_6 = arith.constant 0 : index
    %c0_7 = arith.constant 0 : index
    %11 = vector.load %arg3[%c0_6, %c0_7] : memref<80x32xf32, #tpu.memory_space<vmem>>, vector<80x32xf32>
    %cst_8 = arith.constant 0.000000e+00 : f32
    %12 = vector.broadcast %cst_8 : f32 to vector<12x32xf32>
    %13 = vector.extract_strided_slice %10 {offsets = [0, 0], sizes = [12, 16], strides = [1, 1]} : vector<16x16xf32> to vector<12x16xf32>
    %14 = vector.extract_strided_slice %11 {offsets = [0, 0], sizes = [16, 32], strides = [1, 1]} : vector<80x32xf32> to vector<16x32xf32>
    %cst_9 = arith.constant dense<0.000000e+00> : vector<12x32xf32>
    %15 = tpu.matmul %13, %14, %cst_9 {dimension_numbers = #tpu.dot_dimension_numbers<[1], [0], [0], [1], [0, 0, 1, 1], [], []>} : vector<12x16xf32>, vector<16x32xf32>, vector<12x32xf32> -> vector<12x32xf32>
    %16 = arith.addf %12, %15 : vector<12x32xf32>
    %17 = vector.extract_strided_slice %10 {offsets = [1, 0], sizes = [12, 16], strides = [1, 1]} : vector<16x16xf32> to vector<12x16xf32>
    %18 = vector.extract_strided_slice %11 {offsets = [16, 0], sizes = [16, 32], strides = [1, 1]} : vector<80x32xf32> to vector<16x32xf32>
    %cst_10 = arith.constant dense<0.000000e+00> : vector<12x32xf32>
    %19 = tpu.matmul %17, %18, %cst_10 {dimension_numbers = #tpu.dot_dimension_numbers<[1], [0], [0], [1], [0, 0, 1, 1], [], []>} : vector<12x16xf32>, vector<16x32xf32>, vector<12x32xf32> -> vector<12x32xf32>
    %20 = arith.addf %16, %19 : vector<12x32xf32>
    %21 = vector.extract_strided_slice %10 {offsets = [2, 0], sizes = [12, 16], strides = [1, 1]} : vector<16x16xf32> to vector<12x16xf32>
    %22 = vector.extract_strided_slice %11 {offsets = [32, 0], sizes = [16, 32], strides = [1, 1]} : vector<80x32xf32> to vector<16x32xf32>
    %cst_11 = arith.constant dense<0.000000e+00> : vector<12x32xf32>
    %23 = tpu.matmul %21, %22, %cst_11 {dimension_numbers = #tpu.dot_dimension_numbers<[1], [0], [0], [1], [0, 0, 1, 1], [], []>} : vector<12x16xf32>, vector<16x32xf32>, vector<12x32xf32> -> vector<12x32xf32>
    %24 = arith.addf %20, %23 : vector<12x32xf32>
    %25 = vector.extract_strided_slice %10 {offsets = [3, 0], sizes = [12, 16], strides = [1, 1]} : vector<16x16xf32> to vector<12x16xf32>
    %26 = vector.extract_strided_slice %11 {offsets = [48, 0], sizes = [16, 32], strides = [1, 1]} : vector<80x32xf32> to vector<16x32xf32>
    %cst_12 = arith.constant dense<0.000000e+00> : vector<12x32xf32>
    %27 = tpu.matmul %25, %26, %cst_12 {dimension_numbers = #tpu.dot_dimension_numbers<[1], [0], [0], [1], [0, 0, 1, 1], [], []>} : vector<12x16xf32>, vector<16x32xf32>, vector<12x32xf32> -> vector<12x32xf32>
    %28 = arith.addf %24, %27 : vector<12x32xf32>
    %29 = vector.extract_strided_slice %10 {offsets = [4, 0], sizes = [12, 16], strides = [1, 1]} : vector<16x16xf32> to vector<12x16xf32>
    %30 = vector.extract_strided_slice %11 {offsets = [64, 0], sizes = [16, 32], strides = [1, 1]} : vector<80x32xf32> to vector<16x32xf32>
    %cst_13 = arith.constant dense<0.000000e+00> : vector<12x32xf32>
    %31 = tpu.matmul %29, %30, %cst_13 {dimension_numbers = #tpu.dot_dimension_numbers<[1], [0], [0], [1], [0, 0, 1, 1], [], []>} : vector<12x16xf32>, vector<16x32xf32>, vector<12x32xf32> -> vector<12x32xf32>
    %32 = arith.addf %28, %31 : vector<12x32xf32>
    %c0_14 = arith.constant 0 : index
    %c0_15 = arith.constant 0 : index
    %33 = vector.load %arg4[%c0_14, %c0_15] : memref<1x32xf32, #tpu.memory_space<vmem>>, vector<1x32xf32>
    %34 = vector.broadcast %33 : vector<1x32xf32> to vector<12x32xf32>
    %35 = arith.addf %32, %34 : vector<12x32xf32>
    %cst_16 = arith.constant 0.000000e+00 : f32
    %36 = vector.broadcast %cst_16 : f32 to vector<12x32xf32>
    %37 = arith.maximumf %35, %36 : vector<12x32xf32>
    %38 = vector.extract_strided_slice %37 {offsets = [0, 0], sizes = [1, 32], strides = [1, 1]} : vector<12x32xf32> to vector<1x32xf32>
    %39 = vector.extract_strided_slice %37 {offsets = [1, 0], sizes = [1, 32], strides = [1, 1]} : vector<12x32xf32> to vector<1x32xf32>
    %40 = vector.extract_strided_slice %37 {offsets = [2, 0], sizes = [1, 32], strides = [1, 1]} : vector<12x32xf32> to vector<1x32xf32>
    %41 = vector.extract_strided_slice %37 {offsets = [3, 0], sizes = [1, 32], strides = [1, 1]} : vector<12x32xf32> to vector<1x32xf32>
    %42 = tpu.concatenate %38, %39, %40, %41 in 1 : vector<1x32xf32>, vector<1x32xf32>, vector<1x32xf32>, vector<1x32xf32> -> vector<1x128xf32>
    %43 = vector.extract_strided_slice %37 {offsets = [8, 0], sizes = [1, 32], strides = [1, 1]} : vector<12x32xf32> to vector<1x32xf32>
    %44 = vector.extract_strided_slice %37 {offsets = [9, 0], sizes = [1, 32], strides = [1, 1]} : vector<12x32xf32> to vector<1x32xf32>
    %45 = vector.extract_strided_slice %37 {offsets = [10, 0], sizes = [1, 32], strides = [1, 1]} : vector<12x32xf32> to vector<1x32xf32>
    %46 = vector.extract_strided_slice %37 {offsets = [11, 0], sizes = [1, 32], strides = [1, 1]} : vector<12x32xf32> to vector<1x32xf32>
    %47 = tpu.concatenate %43, %44, %45, %46 in 1 : vector<1x32xf32>, vector<1x32xf32>, vector<1x32xf32>, vector<1x32xf32> -> vector<1x128xf32>
    %48 = tpu.concatenate %42, %47 in 0 : vector<1x128xf32>, vector<1x128xf32> -> vector<2x128xf32>
    %c0_17 = arith.constant 0 : index
    %c0_18 = arith.constant 0 : index
    %49 = vector.load %arg5[%c0_17, %c0_18] : memref<128x8xf32, #tpu.memory_space<vmem>>, vector<128x8xf32>
    %cst_19 = arith.constant dense<0.000000e+00> : vector<2x8xf32>
    %50 = tpu.matmul %48, %49, %cst_19 {dimension_numbers = #tpu.dot_dimension_numbers<[1], [0], [0], [1], [0, 0, 1, 1], [], []>} : vector<2x128xf32>, vector<128x8xf32>, vector<2x8xf32> -> vector<2x8xf32>
    %c0_20 = arith.constant 0 : index
    %c0_21 = arith.constant 0 : index
    %51 = vector.load %arg6[%c0_20, %c0_21] : memref<1x8xf32, #tpu.memory_space<vmem>>, vector<1x8xf32>
    %52 = vector.broadcast %51 : vector<1x8xf32> to vector<2x8xf32>
    %53 = arith.addf %50, %52 : vector<2x8xf32>
    %c0_22 = arith.constant 0 : index
    %c0_23 = arith.constant 0 : index
    %54 = vector.load %arg7[%c0_22, %c0_23] : memref<2x8xf32, #tpu.memory_space<vmem>>, vector<2x8xf32>
    %55 = tpu.concatenate %53, %54 in 1 : vector<2x8xf32>, vector<2x8xf32> -> vector<2x16xf32>
    %c0_24 = arith.constant 0 : index
    %c0_25 = arith.constant 0 : index
    %56 = vector.load %arg8[%c0_24, %c0_25] : memref<16x32xf32, #tpu.memory_space<vmem>>, vector<16x32xf32>
    %cst_26 = arith.constant dense<0.000000e+00> : vector<2x32xf32>
    %57 = tpu.matmul %55, %56, %cst_26 {dimension_numbers = #tpu.dot_dimension_numbers<[1], [0], [0], [1], [0, 0, 1, 1], [], []>} : vector<2x16xf32>, vector<16x32xf32>, vector<2x32xf32> -> vector<2x32xf32>
    %c0_27 = arith.constant 0 : index
    %c0_28 = arith.constant 0 : index
    %58 = vector.load %arg9[%c0_27, %c0_28] : memref<1x32xf32, #tpu.memory_space<vmem>>, vector<1x32xf32>
    %59 = vector.broadcast %58 : vector<1x32xf32> to vector<2x32xf32>
    %60 = arith.addf %57, %59 : vector<2x32xf32>
    %61 = math.tanh %60 : vector<2x32xf32>
    %c0_29 = arith.constant 0 : index
    %c0_30 = arith.constant 0 : index
    %62 = vector.load %arg10[%c0_29, %c0_30] : memref<32x2xf32, #tpu.memory_space<vmem>>, vector<32x2xf32>
    %cst_31 = arith.constant dense<0.000000e+00> : vector<2x2xf32>
    %63 = tpu.matmul %61, %62, %cst_31 {dimension_numbers = #tpu.dot_dimension_numbers<[1], [0], [0], [1], [0, 0, 1, 1], [], []>} : vector<2x32xf32>, vector<32x2xf32>, vector<2x2xf32> -> vector<2x2xf32>
    %c0_32 = arith.constant 0 : index
    %c0_33 = arith.constant 0 : index
    %64 = vector.load %arg11[%c0_32, %c0_33] : memref<1x2xf32, #tpu.memory_space<vmem>>, vector<1x2xf32>
    %65 = vector.broadcast %64 : vector<1x2xf32> to vector<2x2xf32>
    %66 = arith.addf %63, %65 : vector<2x2xf32>
    %67 = vector.extract_strided_slice %66 {offsets = [0, 1], sizes = [2, 1], strides = [1, 1]} : vector<2x2xf32> to vector<2x1xf32>
    %68 = vector.extract_strided_slice %66 {offsets = [0, 0], sizes = [2, 1], strides = [1, 1]} : vector<2x2xf32> to vector<2x1xf32>
    %69 = arith.subf %67, %68 : vector<2x1xf32>
    %70 = math.exp %69 : vector<2x1xf32>
    %cst_34 = arith.constant 1.000000e+00 : f32
    %71 = vector.broadcast %cst_34 : f32 to vector<2x1xf32>
    %72 = arith.addf %71, %70 : vector<2x1xf32>
    %cst_35 = arith.constant 1.000000e+00 : f32
    %73 = vector.broadcast %cst_35 : f32 to vector<2x1xf32>
    %74 = arith.divf %73, %72 : vector<2x1xf32>
    %75 = vector.broadcast %74 : vector<2x1xf32> to vector<2x8xf32>
    %76 = arith.mulf %75, %53 : vector<2x8xf32>
    %cst_36 = arith.constant 1.000000e+00 : f32
    %77 = vector.broadcast %cst_36 : f32 to vector<2x1xf32>
    %78 = arith.subf %77, %74 : vector<2x1xf32>
    %79 = vector.broadcast %78 : vector<2x1xf32> to vector<2x8xf32>
    %80 = arith.mulf %79, %54 : vector<2x8xf32>
    %81 = arith.addf %76, %80 : vector<2x8xf32>
    %82 = tpu.concatenate %53, %54, %81 in 0 : vector<2x8xf32>, vector<2x8xf32>, vector<2x8xf32> -> vector<6x8xf32>
    %c0_37 = arith.constant 0 : index
    %c0_38 = arith.constant 0 : index
    %83 = vector.load %arg12[%c0_37, %c0_38] : memref<8x3xf32, #tpu.memory_space<vmem>>, vector<8x3xf32>
    %cst_39 = arith.constant dense<0.000000e+00> : vector<6x3xf32>
    %84 = tpu.matmul %82, %83, %cst_39 {dimension_numbers = #tpu.dot_dimension_numbers<[1], [0], [0], [1], [0, 0, 1, 1], [], []>} : vector<6x8xf32>, vector<8x3xf32>, vector<6x3xf32> -> vector<6x3xf32>
    %c0_40 = arith.constant 0 : index
    %c0_41 = arith.constant 0 : index
    %85 = vector.load %arg13[%c0_40, %c0_41] : memref<1x3xf32, #tpu.memory_space<vmem>>, vector<1x3xf32>
    %86 = vector.broadcast %85 : vector<1x3xf32> to vector<6x3xf32>
    %87 = arith.addf %84, %86 : vector<6x3xf32>
    %88 = vector.extract_strided_slice %87 {offsets = [0, 0], sizes = [2, 1], strides = [1, 1]} : vector<6x3xf32> to vector<2x1xf32>
    %89 = vector.extract_strided_slice %87 {offsets = [2, 1], sizes = [2, 1], strides = [1, 1]} : vector<6x3xf32> to vector<2x1xf32>
    %90 = vector.extract_strided_slice %87 {offsets = [4, 2], sizes = [2, 1], strides = [1, 1]} : vector<6x3xf32> to vector<2x1xf32>
    %91 = tpu.concatenate %88, %89, %90 in 1 : vector<2x1xf32>, vector<2x1xf32>, vector<2x1xf32> -> vector<2x3xf32>
    %c0_42 = arith.constant 0 : index
    %c0_43 = arith.constant 0 : index
    %92 = vector.load %arg14[%c0_42, %c0_43] : memref<2x3xf32, #tpu.memory_space<vmem>>, vector<2x3xf32>
    tpu.vector_store %arg14[%c0_42, %c0_43], %91 {strides = array<i32>} : memref<2x3xf32, #tpu.memory_space<vmem>>, vector<2x3xf32>,
    return
  }
}

</mosaic_0001>

<llo_original>
// kernel: _lambda_.3
$region0: #{_lambda_.3}
  #allocation0 [shape = 'u32[]', space=smem, size = 0x4, offset = 0x4, fixed_abs, tag = 'smem constant byte address 0x4 - core index']
  #allocation1 [shape = 'u32[72,128]{1,0:T(1,128)}', space=vmem, size = 0x9000, scoped, tag = 'internal scratch']
  %s0 = inlined_call_operand.vmem [shape: f32[32,128], index: 0, kind: input, shape index: {}]
  %s1 = inlined_call_operand.vmem [shape: f32[128,16], index: 1, kind: input, shape index: {}]
  %s2 = inlined_call_operand.vmem [shape: f32[1,16], index: 2, kind: input, shape index: {}]
  %s3 = inlined_call_operand.vmem [shape: f32[80,32], index: 3, kind: input, shape index: {}]
  %s4 = inlined_call_operand.vmem [shape: f32[1,32], index: 4, kind: input, shape index: {}]
  %s5 = inlined_call_operand.vmem [shape: f32[128,8], index: 5, kind: input, shape index: {}]
  %s6 = inlined_call_operand.vmem [shape: f32[1,8], index: 6, kind: input, shape index: {}]
  %s7 = inlined_call_operand.vmem [shape: f32[2,8], index: 7, kind: input, shape index: {}]
  %s8 = inlined_call_operand.vmem [shape: f32[16,32], index: 8, kind: input, shape index: {}]
  %s9 = inlined_call_operand.vmem [shape: f32[1,32], index: 9, kind: input, shape index: {}]
  %s10 = inlined_call_operand.vmem [shape: f32[32,2], index: 10, kind: input, shape index: {}]
  %s11 = inlined_call_operand.vmem [shape: f32[1,2], index: 11, kind: input, shape index: {}]
  %s12 = inlined_call_operand.vmem [shape: f32[8,3], index: 12, kind: input, shape index: {}]
  %s13 = inlined_call_operand.vmem [shape: f32[1,3], index: 13, kind: input, shape index: {}]
  %s14 = inlined_call_operand.vmem [shape: f32[2,3], index: 14, kind: output, shape index: {}]
  %s15 = sld [smem:[#allocation0]]
  $region66: #{_lambda_.3} parent=0
    _
  %s17 = ssub.s32 1, %s15
  %s18 = scalar_select 0, %s17, %s15
  // Predicated region
  $region2: #{_lambda_.3} parent=0 // pred_check
    _
  $region3: #{_lambda_.3} parent=0 // pred_check_branch
    %20 = sbr.rel (0) target = $region5
  $region4: #{_lambda_.3} parent=0 // pred_region
    _
  $region5: #{_lambda_.3} parent=0 // pred_fallthru
    _
  // Predicated region
  $region6: #{_lambda_.3} parent=0 // pred_check
    _
  $region7: #{_lambda_.3} parent=0 // pred_check_branch
    %22 = sbr.rel (0) target = $region9
  $region8: #{_lambda_.3} parent=0 // pred_region
    _
  $region9: #{_lambda_.3} parent=0 // pred_fallthru
    _
  // Predicated region
  $region10: #{_lambda_.3} parent=0 // pred_check
    _
  $region11: #{_lambda_.3} parent=0 // pred_check_branch
    %24 = sbr.rel (0) target = $region13
  $region12: #{_lambda_.3} parent=0 // pred_region
    _
  $region13: #{_lambda_.3} parent=0 // pred_fallthru
    _
  // Predicated region
  $region14: #{_lambda_.3} parent=0 // pred_check
    _
  $region15: #{_lambda_.3} parent=0 // pred_check_branch
    %26 = sbr.rel (0) target = $region17
  $region16: #{_lambda_.3} parent=0 // pred_region
    _
  $region17: #{_lambda_.3} parent=0 // pred_fallthru
    _
  // Predicated region
  $region18: #{_lambda_.3} parent=0 // pred_check
    _
  $region19: #{_lambda_.3} parent=0 // pred_check_branch
    %28 = sbr.rel (0) target = $region21
  $region20: #{_lambda_.3} parent=0 // pred_region
    _
  $region21: #{_lambda_.3} parent=0 // pred_fallthru
    _
  // Predicated region
  $region22: #{_lambda_.3} parent=0 // pred_check
    _
  $region23: #{_lambda_.3} parent=0 // pred_check_branch
    %30 = sbr.rel (0) target = $region25
  $region24: #{_lambda_.3} parent=0 // pred_region
    _
  $region25: #{_lambda_.3} parent=0 // pred_fallthru
    _
  // Predicated region
  $region26: #{_lambda_.3} parent=0 // pred_check
    _
  $region27: #{_lambda_.3} parent=0 // pred_check_branch
    %32 = sbr.rel (0) target = $region29
  $region28: #{_lambda_.3} parent=0 // pred_region
    _
  $region29: #{_lambda_.3} parent=0 // pred_fallthru
    _
  // Predicated region
  $region30: #{_lambda_.3} parent=0 // pred_check
    _
  $region31: #{_lambda_.3} parent=0 // pred_check_branch
    %34 = sbr.rel (0) target = $region33
  $region32: #{_lambda_.3} parent=0 // pred_region
    _
  $region33: #{_lambda_.3} parent=0 // pred_fallthru
    _
  // Predicated region
  $region34: #{_lambda_.3} parent=0 // pred_check
    _
  $region35: #{_lambda_.3} parent=0 // pred_check_branch
    %36 = sbr.rel (0) target = $region37
  $region36: #{_lambda_.3} parent=0 // pred_region
    _
  $region37: #{_lambda_.3} parent=0 // pred_fallthru
    _
  // Predicated region
  $region38: #{_lambda_.3} parent=0 // pred_check
    _
  $region39: #{_lambda_.3} parent=0 // pred_check_branch
    %38 = sbr.rel (0) target = $region41
  $region40: #{_lambda_.3} parent=0 // pred_region
    _
  $region41: #{_lambda_.3} parent=0 // pred_fallthru
    _
  // Predicated region
  $region42: #{_lambda_.3} parent=0 // pred_check
    _
  $region43: #{_lambda_.3} parent=0 // pred_check_branch
    %40 = sbr.rel (0) target = $region45
  $region44: #{_lambda_.3} parent=0 // pred_region
    _
  $region45: #{_lambda_.3} parent=0 // pred_fallthru
    _
  // Predicated region
  $region46: #{_lambda_.3} parent=0 // pred_check
    _
  $region47: #{_lambda_.3} parent=0 // pred_check_branch
    %42 = sbr.rel (0) target = $region49
  $region48: #{_lambda_.3} parent=0 // pred_region
    _
  $region49: #{_lambda_.3} parent=0 // pred_fallthru
    _
  // Predicated region
  $region50: #{_lambda_.3} parent=0 // pred_check
    _
  $region51: #{_lambda_.3} parent=0 // pred_check_branch
    %44 = sbr.rel (0) target = $region53
  $region52: #{_lambda_.3} parent=0 // pred_region
    _
  $region53: #{_lambda_.3} parent=0 // pred_fallthru
    _
  // Predicated region
  $region54: #{_lambda_.3} parent=0 // pred_check
    _
  $region55: #{_lambda_.3} parent=0 // pred_check_branch
    %46 = sbr.rel (0) target = $region57
  $region56: #{_lambda_.3} parent=0 // pred_region
    _
  $region57: #{_lambda_.3} parent=0 // pred_fallthru
    _
  %v47 = vld [vmem:[%s0] sm:$0xff]
  %v48 = vld [vmem:[%s0 + $0x8] sm:$0xff]
  %v49 = vld [vmem:[%s0 + $0x10] sm:$0xff]
  %v50 = vld [vmem:[%s0 + $0x18] sm:$0xff]
  %v51 = vld [vmem:[%s1] sm:$0xff]
  %v52 = vld [vmem:[%s1 + $0x8] sm:$0xff]
  %v53 = vld [vmem:[%s1 + $0x10] sm:$0xff]
  %v54 = vld [vmem:[%s1 + $0x18] sm:$0xff]
  %v55 = vld [vmem:[%s1 + $0x20] sm:$0xff]
  %v56 = vld [vmem:[%s1 + $0x28] sm:$0xff]
  %v57 = vld [vmem:[%s1 + $0x30] sm:$0xff]
  %v58 = vld [vmem:[%s1 + $0x38] sm:$0xff]
  %v59 = vld [vmem:[%s1 + $0x40] sm:$0xff]
  %v60 = vld [vmem:[%s1 + $0x48] sm:$0xff]
  %v61 = vld [vmem:[%s1 + $0x50] sm:$0xff]
  %v62 = vld [vmem:[%s1 + $0x58] sm:$0xff]
  %v63 = vld [vmem:[%s1 + $0x60] sm:$0xff]
  %v64 = vld [vmem:[%s1 + $0x68] sm:$0xff]
  %v65 = vld [vmem:[%s1 + $0x70] sm:$0xff]
  %v66 = vld [vmem:[%s1 + $0x78] sm:$0xff]
  %v67 = vld [vmem:[%s2] sm:$0x1]
  %v69 = vperm.slane %v67, 0
  %71 = vmatpush.msra.mxu0 %v66
  %72 = vmatpush.msra.mxu0 %v65
  %73 = vmatpush.msra.mxu0 %v64
  %74 = vmatpush.msra.mxu0 %v63
  %75 = vmatpush.msra.mxu0 %v62
  %76 = vmatpush.msra.mxu0 %v61
  %77 = vmatpush.msra.mxu0 %v60
  %78 = vmatpush.msra.mxu0 %v59
  %79 = vmatpush.msra.mxu0 %v58
  %80 = vmatpush.msra.mxu0 %v57
  %81 = vmatpush.msra.mxu0 %v56
  %82 = vmatpush.msra.mxu0 %v55
  %83 = vmatpush.msra.mxu0 %v54
  %84 = vmatpush.msra.mxu0 %v53
  %85 = vmatpush.msra.mxu0 %v52
  %86 = vmatpush.msra.mxu0 %v51
  %87 = vmatmul.f32.gmra.mxu0 %v47
  %v88 = vpop.f32.mrf.mxu0
  %v89 = vadd.f32 %v69, %v88
  %90 = vmatmul.f32.gmra.mxu0 %v48
  %v91 = vpop.f32.mrf.mxu0
  %v92 = vadd.f32 %v69, %v91
  %93 = vmatmul.f32.gmra.mxu0 %v49
  %v94 = vpop.f32.mrf.mxu0
  %v95 = vadd.f32 %v69, %v94
  %96 = vmatmul.f32.gmra.mxu0 %v50
  %v97 = vpop.f32.mrf.mxu0
  %v98 = vadd.f32 %v69, %v97
  %99 = vdwg.mxu0
  %v100 = vmax.f32 %v89, 0.0
  %v101 = vmax.f32 %v92, 0.0
  %v102 = vmax.f32 %v95, 0.0
  %v103 = vmax.f32 %v98, 0.0
  %v104 = vmax.f32 %v100, %v102
  %v105 = vmax.f32 %v101, %v103
  %v106 = vld [vmem:[%s3] sm:$0xff]
  %v107 = vld [vmem:[%s3 + $0x8] sm:$0xff]
  %v108 = vld [vmem:[%s3 + $0x10] sm:$0xff]
  %v109 = vld [vmem:[%s3 + $0x18] sm:$0xff]
  %v110 = vld [vmem:[%s3 + $0x20] sm:$0xff]
  %v111 = vld [vmem:[%s3 + $0x28] sm:$0xff]
  %v112 = vld [vmem:[%s3 + $0x30] sm:$0xff]
  %v113 = vld [vmem:[%s3 + $0x38] sm:$0xff]
  %v114 = vld [vmem:[%s3 + $0x40] sm:$0xff]
  %v115 = vld [vmem:[%s3 + $0x48] sm:$0xff]
  %vm118 = vcmask 1046528
  %v119 = vrot.slane %v104, 1
  %v120 = vrot.slane %v105, 1
  %v121 = vsel %vm118, %v119, %v120
  %vm122 = vcmask 130048
  %v123 = vsel %vm122, %v121, 0
  %v125 = vsel %vm122, %v120, 0
  %127 = vmatpush.msra.mxu0 0.0
  %128 = vmatpush.msra.mxu0 0.0
  %129 = vmatpush.msra.mxu0 0.0
  %130 = vmatpush.msra.mxu0 0.0
  %131 = vmatpush.msra.mxu0 0.0
  %132 = vmatpush.msra.mxu0 0.0
  %133 = vmatpush.msra.mxu0 0.0
  %134 = vmatpush.msra.mxu0 0.0
  %135 = vmatpush.msra.mxu0 0.0
  %136 = vmatpush.msra.mxu0 0.0
  %137 = vmatpush.msra.mxu0 0.0
  %138 = vmatpush.msra.mxu0 0.0
  %139 = vmatpush.msra.mxu0 0.0
  %140 = vmatpush.msra.mxu0 0.0
  %141 = vmatpush.msra.mxu0 %v109
  %142 = vmatpush.msra.mxu0 %v108
  %143 = vmatmul.f32.gmra.mxu0 %v123
  %v144 = vpop.f32.mrf.mxu0
  %v145 = vadd.f32 0.0, %v144
  %146 = vmatmul.f32.gmra.mxu0 %v125
  %v147 = vpop.f32.mrf.mxu0
  %v148 = vadd.f32 0.0, %v147
  %149 = vdwg.mxu0
  %v150 = vsel %vm122, %v104, 0
  %v152 = vsel %vm122, %v105, 0
  %154 = vmatpush.msra.mxu0 0.0
  %155 = vmatpush.msra.mxu0 0.0
  %156 = vmatpush.msra.mxu0 0.0
  %157 = vmatpush.msra.mxu0 0.0
  %158 = vmatpush.msra.mxu0 0.0
  %159 = vmatpush.msra.mxu0 0.0
  %160 = vmatpush.msra.mxu0 0.0
  %161 = vmatpush.msra.mxu0 0.0
  %162 = vmatpush.msra.mxu0 0.0
  %163 = vmatpush.msra.mxu0 0.0
  %164 = vmatpush.msra.mxu0 0.0
  %165 = vmatpush.msra.mxu0 0.0
  %166 = vmatpush.msra.mxu0 0.0
  %167 = vmatpush.msra.mxu0 0.0
  %168 = vmatpush.msra.mxu0 %v107
  %169 = vmatpush.msra.mxu0 %v106
  %170 = vmatmul.f32.gmra.mxu0 %v150
  %v171 = vpop.f32.mrf.mxu0
  %v172 = vadd.f32 %v145, %v171
  %173 = vmatmul.f32.gmra.mxu0 %v152
  %v174 = vpop.f32.mrf.mxu0
  %v175 = vadd.f32 %v148, %v174
  %176 = vdwg.mxu0
  %vm177 = vcmask 1045504
  %v178 = vrot.slane %v104, 2
  %v179 = vrot.slane %v105, 2
  %v180 = vsel %vm177, %v178, %v179
  %v181 = vsel %vm122, %v180, 0
  %v183 = vsel %vm122, %v179, 0
  %185 = vmatpush.msra.mxu0 0.0
  %186 = vmatpush.msra.mxu0 0.0
  %187 = vmatpush.msra.mxu0 0.0
  %188 = vmatpush.msra.mxu0 0.0
  %189 = vmatpush.msra.mxu0 0.0
  %190 = vmatpush.msra.mxu0 0.0
  %191 = vmatpush.msra.mxu0 0.0
  %192 = vmatpush.msra.mxu0 0.0
  %193 = vmatpush.msra.mxu0 0.0
  %194 = vmatpush.msra.mxu0 0.0
  %195 = vmatpush.msra.mxu0 0.0
  %196 = vmatpush.msra.mxu0 0.0
  %197 = vmatpush.msra.mxu0 0.0
  %198 = vmatpush.msra.mxu0 0.0
  %199 = vmatpush.msra.mxu0 %v111
  %200 = vmatpush.msra.mxu0 %v110
  %201 = vmatmul.f32.gmra.mxu0 %v181
  %v202 = vpop.f32.mrf.mxu0
  %v203 = vadd.f32 0.0, %v202
  %204 = vmatmul.f32.gmra.mxu0 %v183
  %v205 = vpop.f32.mrf.mxu0
  %v206 = vadd.f32 0.0, %v205
  %207 = vdwg.mxu0
  %v208 = vadd.f32 %v172, %v203
  %v209 = vadd.f32 %v175, %v206
  %vm210 = vcmask 1044480
  %v211 = vrot.slane %v104, 3
  %v212 = vrot.slane %v105, 3
  %v213 = vsel %vm210, %v211, %v212
  %v214 = vsel %vm122, %v213, 0
  %v216 = vsel %vm122, %v212, 0
  %218 = vmatpush.msra.mxu0 0.0
  %219 = vmatpush.msra.mxu0 0.0
  %220 = vmatpush.msra.mxu0 0.0
  %221 = vmatpush.msra.mxu0 0.0
  %222 = vmatpush.msra.mxu0 0.0
  %223 = vmatpush.msra.mxu0 0.0
  %224 = vmatpush.msra.mxu0 0.0
  %225 = vmatpush.msra.mxu0 0.0
  %226 = vmatpush.msra.mxu0 0.0
  %227 = vmatpush.msra.mxu0 0.0
  %228 = vmatpush.msra.mxu0 0.0
  %229 = vmatpush.msra.mxu0 0.0
  %230 = vmatpush.msra.mxu0 0.0
  %231 = vmatpush.msra.mxu0 0.0
  %232 = vmatpush.msra.mxu0 %v113
  %233 = vmatpush.msra.mxu0 %v112
  %234 = vmatmul.f32.gmra.mxu0 %v214
  %v235 = vpop.f32.mrf.mxu0
  %v236 = vadd.f32 0.0, %v235
  %237 = vmatmul.f32.gmra.mxu0 %v216
  %v238 = vpop.f32.mrf.mxu0
  %v239 = vadd.f32 0.0, %v238
  %240 = vdwg.mxu0
  %v241 = vadd.f32 %v208, %v236
  %v242 = vadd.f32 %v209, %v239
  %vm243 = vcmask 1043456
  %v244 = vrot.slane %v104, 4
  %v245 = vrot.slane %v105, 4
  %v246 = vsel %vm243, %v244, %v245
  %v247 = vsel %vm122, %v246, 0
  %v249 = vsel %vm122, %v245, 0
  %251 = vmatpush.msra.mxu0 0.0
  %252 = vmatpush.msra.mxu0 0.0
  %253 = vmatpush.msra.mxu0 0.0
  %254 = vmatpush.msra.mxu0 0.0
  %255 = vmatpush.msra.mxu0 0.0
  %256 = vmatpush.msra.mxu0 0.0
  %257 = vmatpush.msra.mxu0 0.0
  %258 = vmatpush.msra.mxu0 0.0
  %259 = vmatpush.msra.mxu0 0.0
  %260 = vmatpush.msra.mxu0 0.0
  %261 = vmatpush.msra.mxu0 0.0
  %262 = vmatpush.msra.mxu0 0.0
  %263 = vmatpush.msra.mxu0 0.0
  %264 = vmatpush.msra.mxu0 0.0
  %265 = vmatpush.msra.mxu0 %v115
  %266 = vmatpush.msra.mxu0 %v114
  %267 = vmatmul.f32.gmra.mxu0 %v247
  %v268 = vpop.f32.mrf.mxu0
  %v269 = vadd.f32 0.0, %v268
  %270 = vmatmul.f32.gmra.mxu0 %v249
  %v271 = vpop.f32.mrf.mxu0
  %v272 = vadd.f32 0.0, %v271
  %273 = vdwg.mxu0
  %v274 = vadd.f32 %v241, %v269
  %v275 = vadd.f32 %v242, %v272
  %v276 = vld [vmem:[%s4] sm:$0x1]
  %v278 = vperm.slane %v276, 0
  %v280 = vadd.f32 %v274, %v278
  %v281 = vadd.f32 %v275, %v278
  %v282 = vmax.f32 %v280, 0.0
  %v283 = vmax.f32 %v281, 0.0
  %v285 = vrot.slane %v282, 1
  %286 = vrot.lane.b32.xlu0 %v285, 32
  %v287 = vpop.permute.xlu0 %286
  %v289 = vrot.slane %v282, 2
  %290 = vrot.lane.b32.xlu0 %v289, 64
  %v291 = vpop.permute.xlu0 %290
  %v293 = vrot.slane %v282, 3
  %294 = vrot.lane.b32.xlu0 %v293, 96
  %v295 = vpop.permute.xlu0 %294
  %vm297 = vcmask 261120
  %v298 = vsel %vm297, %v282, %v287
  %vm299 = vcmask 523264
  %v300 = vsel %vm299, %v298, %v291
  %vm301 = vcmask 785408
  %v302 = vsel %vm301, %v300, %v295
  %v304 = vrot.slane %v283, 1
  %305 = vrot.lane.b32.xlu0 %v304, 32
  %v306 = vpop.permute.xlu0 %305
  %v308 = vrot.slane %v283, 2
  %309 = vrot.lane.b32.xlu0 %v308, 64
  %v310 = vpop.permute.xlu0 %309
  %v312 = vrot.slane %v283, 3
  %313 = vrot.lane.b32.xlu0 %v312, 96
  %v314 = vpop.permute.xlu0 %313
  %v316 = vsel %vm297, %v283, %v306
  %v317 = vsel %vm299, %v316, %v310
  %v318 = vsel %vm301, %v317, %v314
  %v320 = vrot.slane %v318, 7
  %vm322 = vcmask 1040384
  %v323 = vsel %vm322, %v302, %v320
  %v324 = vld [vmem:[%s5] sm:$0xff]
  %v325 = vld [vmem:[%s5 + $0x8] sm:$0xff]
  %v326 = vld [vmem:[%s5 + $0x10] sm:$0xff]
  %v327 = vld [vmem:[%s5 + $0x18] sm:$0xff]
  %v328 = vld [vmem:[%s5 + $0x20] sm:$0xff]
  %v329 = vld [vmem:[%s5 + $0x28] sm:$0xff]
  %v330 = vld [vmem:[%s5 + $0x30] sm:$0xff]
  %v331 = vld [vmem:[%s5 + $0x38] sm:$0xff]
  %v332 = vld [vmem:[%s5 + $0x40] sm:$0xff]
  %v333 = vld [vmem:[%s5 + $0x48] sm:$0xff]
  %v334 = vld [vmem:[%s5 + $0x50] sm:$0xff]
  %v335 = vld [vmem:[%s5 + $0x58] sm:$0xff]
  %v336 = vld [vmem:[%s5 + $0x60] sm:$0xff]
  %v337 = vld [vmem:[%s5 + $0x68] sm:$0xff]
  %v338 = vld [vmem:[%s5 + $0x70] sm:$0xff]
  %v339 = vld [vmem:[%s5 + $0x78] sm:$0xff]
  %v340 = vld [vmem:[%s6] sm:$0x1]
  %v342 = vperm.slane %v340, 0
  %344 = vmatpush.msra.mxu0 %v339
  %345 = vmatpush.msra.mxu0 %v338
  %346 = vmatpush.msra.mxu0 %v337
  %347 = vmatpush.msra.mxu0 %v336
  %348 = vmatpush.msra.mxu0 %v335
  %349 = vmatpush.msra.mxu0 %v334
  %350 = vmatpush.msra.mxu0 %v333
  %351 = vmatpush.msra.mxu0 %v332
  %352 = vmatpush.msra.mxu0 %v331
  %353 = vmatpush.msra.mxu0 %v330
  %354 = vmatpush.msra.mxu0 %v329
  %355 = vmatpush.msra.mxu0 %v328
  %356 = vmatpush.msra.mxu0 %v327
  %357 = vmatpush.msra.mxu0 %v326
  %358 = vmatpush.msra.mxu0 %v325
  %359 = vmatpush.msra.mxu0 %v324
  %360 = vmatmul.f32.gmra.mxu0 %v323
  %v361 = vpop.f32.mrf.mxu0
  %v362 = vadd.f32 %v342, %v361
  %363 = vdwg.mxu0
  %v364 = vld [vmem:[%s7] sm:$0x3]
  %366 = vrot.lane.b32.xlu0 %v364, 8
  %v367 = vpop.permute.xlu0 %366
  %vm369 = vcmask 64512
  %v370 = vsel %vm369, %v362, %v367
  %v371 = vld [vmem:[%s8] sm:$0xff]
  %v372 = vld [vmem:[%s8 + $0x8] sm:$0xff]
  %v373 = vld [vmem:[%s9] sm:$0x1]
  %v375 = vperm.slane %v373, 0
  %v378 = vsel %vm122, %v370, 0
  %380 = vmatpush.msra.mxu0 0.0
  %381 = vmatpush.msra.mxu0 0.0
  %382 = vmatpush.msra.mxu0 0.0
  %383 = vmatpush.msra.mxu0 0.0
  %384 = vmatpush.msra.mxu0 0.0
  %385 = vmatpush.msra.mxu0 0.0
  %386 = vmatpush.msra.mxu0 0.0
  %387 = vmatpush.msra.mxu0 0.0
  %388 = vmatpush.msra.mxu0 0.0
  %389 = vmatpush.msra.mxu0 0.0
  %390 = vmatpush.msra.mxu0 0.0
  %391 = vmatpush.msra.mxu0 0.0
  %392 = vmatpush.msra.mxu0 0.0
  %393 = vmatpush.msra.mxu0 0.0
  %394 = vmatpush.msra.mxu0 %v372
  %395 = vmatpush.msra.mxu0 %v371
  %396 = vmatmul.f32.gmra.mxu0 %v378
  %v397 = vpop.f32.mrf.mxu0
  %v398 = vadd.f32 %v375, %v397
  %399 = vdwg.mxu0
  %v400 = vtanh.pop %v398
  %v401 = vld [vmem:[%s10] sm:$0xff]
  %v402 = vld [vmem:[%s10 + $0x8] sm:$0xff]
  %v403 = vld [vmem:[%s10 + $0x10] sm:$0xff]
  %v404 = vld [vmem:[%s10 + $0x18] sm:$0xff]
  %v405 = vld [vmem:[%s11] sm:$0x1]
  %v407 = vperm.slane %v405, 0
  %v410 = vsel %vm297, %v400, 0
  %412 = vmatpush.msra.mxu0 0.0
  %413 = vmatpush.msra.mxu0 0.0
  %414 = vmatpush.msra.mxu0 0.0
  %415 = vmatpush.msra.mxu0 0.0
  %416 = vmatpush.msra.mxu0 0.0
  %417 = vmatpush.msra.mxu0 0.0
  %418 = vmatpush.msra.mxu0 0.0
  %419 = vmatpush.msra.mxu0 0.0
  %420 = vmatpush.msra.mxu0 0.0
  %421 = vmatpush.msra.mxu0 0.0
  %422 = vmatpush.msra.mxu0 0.0
  %423 = vmatpush.msra.mxu0 0.0
  %424 = vmatpush.msra.mxu0 %v404
  %425 = vmatpush.msra.mxu0 %v403
  %426 = vmatpush.msra.mxu0 %v402
  %427 = vmatpush.msra.mxu0 %v401
  %428 = vmatmul.f32.gmra.mxu0 %v410
  %v429 = vpop.f32.mrf.mxu0
  %v430 = vadd.f32 %v407, %v429
  %431 = vdwg.mxu0
  %433 = vrot.lane.b32.xlu0 %v430, 1
  %v434 = vpop.permute.xlu0 %433
  %v436 = vsub.f32 %v430, %v434
  %v437 = vmul.f32 %v436, 1.442695
  %v438 = vpow.pop %v437
  %v439 = vadd.f32 %v438, 1.0
  %v440 = vrcp.pop %v439
  %v441 = vmul.f32 %v439, %v440
  %v442 = vsub.f32 1.0, %v441
  %v443 = vmul.f32 %v440, %v442
  %v444 = vadd.f32 %v440, %v443
  %vm445 = vweird.f32 %v439
  %vm446 = vweird.f32 %v440
  %vm447 = vmor %vm445, %vm446
  %v448 = vsel %vm447, %v440, %v444
  %v449 = vand.u32 2147483647, %v439
  %vm450 = vcmp.eq.f32.partialorder %v449, 8.507059e+37
  %v451 = vand.u32 %v439, 2147483648
  %v452 = vor.u32 1.1754944e-38, %v451
  %v453 = vsel %vm450, %v452, %v448
  %v454 = vmul.f32 1.0, %v453
  %456 = vset.pattern.permute.xlu0 1
  %457 = vperm.xlu0 %456, %v454
  %v458 = vpop.permute.xlu0 %457
  %v460 = vmul.f32 %v458, %v362
  %v461 = vsub.f32 1.0, %v454
  %463 = vset.pattern.permute.xlu0 1
  %464 = vperm.xlu0 %463, %v461
  %v465 = vpop.permute.xlu0 %464
  %v467 = vmul.f32 %v465, %v364
  %v468 = vadd.f32 %v460, %v467
  %v469 = vrot.slane %v364, 6
  %v472 = vrot.slane %v468, 4
  %vm474 = vcmask 1041408
  %v475 = vsel %vm474, %v362, %v469
  %v476 = vsel %vm243, %v475, %v472
  %v477 = vld [vmem:[%s12] sm:$0xff]
  %v478 = vld [vmem:[%s13] sm:$0x1]
  %v480 = vperm.slane %v478, 0
  %v483 = vsel %vm369, %v476, 0
  %485 = vmatpush.msra.mxu0 0.0
  %486 = vmatpush.msra.mxu0 0.0
  %487 = vmatpush.msra.mxu0 0.0
  %488 = vmatpush.msra.mxu0 0.0
  %489 = vmatpush.msra.mxu0 0.0
  %490 = vmatpush.msra.mxu0 0.0
  %491 = vmatpush.msra.mxu0 0.0
  %492 = vmatpush.msra.mxu0 0.0
  %493 = vmatpush.msra.mxu0 0.0
  %494 = vmatpush.msra.mxu0 0.0
  %495 = vmatpush.msra.mxu0 0.0
  %496 = vmatpush.msra.mxu0 0.0
  %497 = vmatpush.msra.mxu0 0.0
  %498 = vmatpush.msra.mxu0 0.0
  %499 = vmatpush.msra.mxu0 0.0
  %500 = vmatpush.msra.mxu0 %v477
  %501 = vmatmul.f32.gmra.mxu0 %v483
  %v502 = vpop.f32.mrf.mxu0
  %v503 = vadd.f32 %v480, %v502
  %504 = vdwg.mxu0
  %v506 = vrot.slane %v503, 2
  %v508 = vrot.slane %v503, 4
  %vm510 = vcmask 7168
  %v511 = vsel %vm510, %v503, %v506
  %vm512 = vcmask 15360
  %v513 = vsel %vm512, %v511, %v508
  %vm514 = vcmask 17408
  %515 = vst.msk [vmem:[%s14] sm:$0x3] %vm514, %v513
  // Predicated region
  $region58: #{_lambda_.3} parent=0 // pred_check
    _
  $region59: #{_lambda_.3} parent=0 // pred_check_branch
    %517 = sbr.rel (0) target = $region61
  $region60: #{_lambda_.3} parent=0 // pred_region
    _
  $region61: #{_lambda_.3} parent=0 // pred_fallthru
    _
  // Predicated region
  $region62: #{_lambda_.3} parent=0 // pred_check
    _
  $region63: #{_lambda_.3} parent=0 // pred_check_branch
    %519 = sbr.rel (0) target = $region65
  $region64: #{_lambda_.3} parent=0 // pred_region
    _
  $region65: #{_lambda_.3} parent=0 // pred_fallthru
    _

// kernel: _lambda_.2
$region0: #{_lambda_.2}
  #allocation0 [shape = 'u32[]', space=smem, size = 0x4, offset = 0x4, fixed_abs, tag = 'smem constant byte address 0x4 - core index']
  #allocation1 [shape = 'u32[72,128]{1,0:T(1,128)}', space=vmem, size = 0x9000, scoped, tag = 'internal scratch']
  #allocation2 [shape = 'f32[28,8]{1,0:T(8,128)}', space=vmem, size = 0x4000, scoped, tag = 'scratch operand']
  #allocation3 [shape = 'f32[1,1]{1,0:T(1,128)S(1)}', space=vmem, size = 0x200, scoped, tag = 'scoped memory for _lambda_.2']
  %s0 = inlined_call_operand.vmem [shape: s32[4], index: 0, kind: input, shape index: {}]
  %s1 = inlined_call_operand.vmem [shape: f32[28,28], index: 1, kind: input, shape index: {}]
  %s2 = inlined_call_operand.vmem [shape: f32[28,4], index: 2, kind: input, shape index: {}]
  %s3 = inlined_call_operand.vmem [shape: f32[28,32], index: 3, kind: input, shape index: {}]
  %s4 = inlined_call_operand.vmem [shape: f32[4,32], index: 4, kind: input, shape index: {}]
  %s5 = inlined_call_operand.vmem [shape: f32[1,32], index: 5, kind: input, shape index: {}]
  %s6 = inlined_call_operand.vmem [shape: f32[32,32], index: 6, kind: input, shape index: {}]
  %s7 = inlined_call_operand.vmem [shape: f32[1,32], index: 7, kind: input, shape index: {}]
  %s8 = inlined_call_operand.vmem [shape: f32[32,32], index: 8, kind: input, shape index: {}]
  %s9 = inlined_call_operand.vmem [shape: f32[1,32], index: 9, kind: input, shape index: {}]
  %s10 = inlined_call_operand.vmem [shape: f32[32,1], index: 10, kind: input, shape index: {}]
  %s11 = inlined_call_operand.<no memory space> [shape: f32[1,1], index: 11, kind: input, shape index: {}]
  %s12 = inlined_call_operand.vmem [shape: f32[32,64], index: 12, kind: input, shape index: {}]
  %s13 = inlined_call_operand.vmem [shape: f32[1,64], index: 13, kind: input, shape index: {}]
  %s14 = inlined_call_operand.vmem [shape: f32[64,8], index: 14, kind: input, shape index: {}]
  %s15 = inlined_call_operand.vmem [shape: f32[1,8], index: 15, kind: input, shape index: {}]
  %s16 = inlined_call_operand.vmem [shape: f32[28,128], index: 16, kind: output, shape index: {0}]
  %s17 = inlined_call_operand.vmem [shape: f32[2,8], index: 17, kind: output, shape index: {1}]
  %18 = xla_tuple %s16, %s17
  %s19 = sld [smem:[#allocation0]]
  $region86: #{_lambda_.2} parent=0
    _
  %s21 = ssub.s32 1, %s19
  %s22 = scalar_select 0, %s21, %s19
  %v23 = vstv %s11
  %24 = vst [vmem:[#allocation3] sm:$0x1] %v23
  $region1: #{_lambda_.2} parent=0
    #allocation4 [shape = 'u8[512]{0}', space=smem, size = 0x200, scoped, tag = 'input window, operand 0, single buffered']
    #allocation5 [shape = 's32[1]{0}', space=sflag, size = 0x4, scoped, tag = 'scoped memory for _lambda_.2']
    %25 = vsyncpa [#allocation5], 0
    // Predicated region
    $region2: #{_lambda_.2} parent=1 // pred_check
      _
    $region3: #{_lambda_.2} parent=1 // pred_check_branch
      %27 = sbr.rel (0) target = $region5
    $region4: #{_lambda_.2} parent=1 // pred_region
      %29 = vsyncadd [#allocation5], 0
      %s31 = sshll.u32 %s0, 4
      %s32 = int_to_ptr.vmem [resolvable:$true] %s31
      %34 = dma.vmem_to_smem %s32, 16, [#allocation4], [#allocation5]
    $region5: #{_lambda_.2} parent=1 // pred_fallthru
      _
    // Predicated region
    $region6: #{_lambda_.2} parent=1 // pred_check
      _
    $region7: #{_lambda_.2} parent=1 // pred_check_branch
      %36 = sbr.rel (0) target = $region9
    $region8: #{_lambda_.2} parent=1 // pred_region
      _
    $region9: #{_lambda_.2} parent=1 // pred_fallthru
      _
    // Predicated region
    $region10: #{_lambda_.2} parent=1 // pred_check
      _
    $region11: #{_lambda_.2} parent=1 // pred_check_branch
      %38 = sbr.rel (0) target = $region13
    $region12: #{_lambda_.2} parent=1 // pred_region
      _
    $region13: #{_lambda_.2} parent=1 // pred_fallthru
      _
    // Predicated region
    $region14: #{_lambda_.2} parent=1 // pred_check
      _
    $region15: #{_lambda_.2} parent=1 // pred_check_branch
      %40 = sbr.rel (0) target = $region17
    $region16: #{_lambda_.2} parent=1 // pred_region
      _
    $region17: #{_lambda_.2} parent=1 // pred_fallthru
      _
    // Predicated region
    $region18: #{_lambda_.2} parent=1 // pred_check
      _
    $region19: #{_lambda_.2} parent=1 // pred_check_branch
      %42 = sbr.rel (0) target = $region21
    $region20: #{_lambda_.2} parent=1 // pred_region
      _
    $region21: #{_lambda_.2} parent=1 // pred_fallthru
      _
    // Predicated region
    $region22: #{_lambda_.2} parent=1 // pred_check
      _
    $region23: #{_lambda_.2} parent=1 // pred_check_branch
      %44 = sbr.rel (0) target = $region25
    $region24: #{_lambda_.2} parent=1 // pred_region
      _
    $region25: #{_lambda_.2} parent=1 // pred_fallthru
      _
    // Predicated region
    $region26: #{_lambda_.2} parent=1 // pred_check
      _
    $region27: #{_lambda_.2} parent=1 // pred_check_branch
      %46 = sbr.rel (0) target = $region29
    $region28: #{_lambda_.2} parent=1 // pred_region
      _
    $region29: #{_lambda_.2} parent=1 // pred_fallthru
      _
    // Predicated region
    $region30: #{_lambda_.2} parent=1 // pred_check
      _
    $region31: #{_lambda_.2} parent=1 // pred_check_branch
      %48 = sbr.rel (0) target = $region33
    $region32: #{_lambda_.2} parent=1 // pred_region
      _
    $region33: #{_lambda_.2} parent=1 // pred_fallthru
      _
    // Predicated region
    $region34: #{_lambda_.2} parent=1 // pred_check
      _
    $region35: #{_lambda_.2} parent=1 // pred_check_branch
      %50 = sbr.rel (0) target = $region37
    $region36: #{_lambda_.2} parent=1 // pred_region
      _
    $region37: #{_lambda_.2} parent=1 // pred_fallthru
      _
    // Predicated region
    $region38: #{_lambda_.2} parent=1 // pred_check
      _
    $region39: #{_lambda_.2} parent=1 // pred_check_branch
      %52 = sbr.rel (0) target = $region41
    $region40: #{_lambda_.2} parent=1 // pred_region
      _
    $region41: #{_lambda_.2} parent=1 // pred_fallthru
      _
    // Predicated region
    $region42: #{_lambda_.2} parent=1 // pred_check
      _
    $region43: #{_lambda_.2} parent=1 // pred_check_branch
      %54 = sbr.rel (0) target = $region45
    $region44: #{_lambda_.2} parent=1 // pred_region
      _
    $region45: #{_lambda_.2} parent=1 // pred_fallthru
      _
    // Predicated region
    $region46: #{_lambda_.2} parent=1 // pred_check
      _
    $region47: #{_lambda_.2} parent=1 // pred_check_branch
      %56 = sbr.rel (0) target = $region49
    $region48: #{_lambda_.2} parent=1 // pred_region
      _
    $region49: #{_lambda_.2} parent=1 // pred_fallthru
      _
    // Predicated region
    $region50: #{_lambda_.2} parent=1 // pred_check
      _
    $region51: #{_lambda_.2} parent=1 // pred_check_branch
      %58 = sbr.rel (0) target = $region53
    $region52: #{_lambda_.2} parent=1 // pred_region
      _
    $region53: #{_lambda_.2} parent=1 // pred_fallthru
      _
    // Predicated region
    $region54: #{_lambda_.2} parent=1 // pred_check
      _
    $region55: #{_lambda_.2} parent=1 // pred_check_branch
      %60 = sbr.rel (0) target = $region57
    $region56: #{_lambda_.2} parent=1 // pred_region
      _
    $region57: #{_lambda_.2} parent=1 // pred_fallthru
      _
    // Predicated region
    $region58: #{_lambda_.2} parent=1 // pred_check
      _
    $region59: #{_lambda_.2} parent=1 // pred_check_branch
      %62 = sbr.rel (0) target = $region61
    $region60: #{_lambda_.2} parent=1 // pred_region
      _
    $region61: #{_lambda_.2} parent=1 // pred_fallthru
      _
    // Predicated region
    $region62: #{_lambda_.2} parent=1 // pred_check
      _
    $region63: #{_lambda_.2} parent=1 // pred_check_branch
      %64 = sbr.rel (0) target = $region65
    $region64: #{_lambda_.2} parent=1 // pred_region
      _
    $region65: #{_lambda_.2} parent=1 // pred_fallthru
      _
    // Predicated region
    $region66: #{_lambda_.2} parent=1 // pred_check
      _
    $region67: #{_lambda_.2} parent=1 // pred_check_branch
      %66 = sbr.rel (0) target = $region69
    $region68: #{_lambda_.2} parent=1 // pred_region
      %68 = dma.done [#allocation5], 16
    $region69: #{_lambda_.2} parent=1 // pred_fallthru
      _
    %69 = sfence
    %v70 = vld [vmem:[%s1] sm:$0xff]
    %v71 = vld [vmem:[%s1 + $0x8] sm:$0xff]
    %v72 = vld [vmem:[%s1 + $0x10] sm:$0xff]
    %v73 = vld [vmem:[%s1 + $0x18] sm:$0xf]
    %v74 = vld [vmem:[%s2] sm:$0xff]
    %v75 = vld [vmem:[%s2 + $0x8] sm:$0xff]
    %v76 = vld [vmem:[%s2 + $0x10] sm:$0xff]
    %v77 = vld [vmem:[%s2 + $0x18] sm:$0xf]
    %v78 = vld [vmem:[%s4] sm:$0xf]
    %v79 = vld [vmem:[%s5] sm:$0x1]
    %vm80 = vcmask 31744
    %v82 = vsel %vm80, %v74, 0
    %v85 = vsel %vm80, %v75, 0
    %v88 = vsel %vm80, %v76, 0
    %v91 = vsel %vm80, %v77, 0
    %vm93 = vcmask 1043456
    %v95 = vsel %vm93, %v78, 0
    %97 = vmatpush.msra.mxu0 0.0
    %98 = vmatpush.msra.mxu0 0.0
    %99 = vmatpush.msra.mxu0 0.0
    %100 = vmatpush.msra.mxu0 0.0
    %101 = vmatpush.msra.mxu0 0.0
    %102 = vmatpush.msra.mxu0 0.0
    %103 = vmatpush.msra.mxu0 0.0
    %104 = vmatpush.msra.mxu0 0.0
    %105 = vmatpush.msra.mxu0 0.0
    %106 = vmatpush.msra.mxu0 0.0
    %107 = vmatpush.msra.mxu0 0.0
    %108 = vmatpush.msra.mxu0 0.0
    %109 = vmatpush.msra.mxu0 0.0
    %110 = vmatpush.msra.mxu0 0.0
    %111 = vmatpush.msra.mxu0 0.0
    %112 = vmatpush.msra.mxu0 %v95
    %113 = vmatmul.f32.gmra.mxu0 %v82
    %v114 = vpop.f32.mrf.mxu0
    %v115 = vadd.f32 0.0, %v114
    %116 = vmatmul.f32.gmra.mxu0 %v85
    %v117 = vpop.f32.mrf.mxu0
    %v118 = vadd.f32 0.0, %v117
    %119 = vmatmul.f32.gmra.mxu0 %v88
    %v120 = vpop.f32.mrf.mxu0
    %v121 = vadd.f32 0.0, %v120
    %122 = vmatmul.f32.gmra.mxu0 %v91
    %v123 = vpop.f32.mrf.mxu0
    %v124 = vadd.f32 0.0, %v123
    %125 = vdwg.mxu0
    %v127 = vperm.slane %v79, 0
    %vm129 = vcmask 228352
    %v131 = vsel %vm129, %v70, 0
    %v134 = vsel %vm129, %v71, 0
    %v137 = vsel %vm129, %v72, 0
    %v140 = vsel %vm129, %v73, 0
    %v143 = vsel %vm93, %v124, 0
    %145 = vmatpush.msra.mxu0 0.0
    %146 = vmatpush.msra.mxu0 0.0
    %147 = vmatpush.msra.mxu0 0.0
    %148 = vmatpush.msra.mxu0 0.0
    %149 = vmatpush.msra.mxu0 0.0
    %150 = vmatpush.msra.mxu0 0.0
    %151 = vmatpush.msra.mxu0 0.0
    %152 = vmatpush.msra.mxu0 0.0
    %153 = vmatpush.msra.mxu0 0.0
    %154 = vmatpush.msra.mxu0 0.0
    %155 = vmatpush.msra.mxu0 0.0
    %156 = vmatpush.msra.mxu0 0.0
    %157 = vmatpush.msra.mxu0 %v143
    %158 = vmatpush.msra.mxu0 %v121
    %159 = vmatpush.msra.mxu0 %v118
    %160 = vmatpush.msra.mxu0 %v115
    %161 = vmatmul.f32.gmra.mxu0 %v131
    %v162 = vpop.f32.mrf.mxu0
    %v163 = vadd.f32 %v127, %v162
    %164 = vmatmul.f32.gmra.mxu0 %v134
    %v165 = vpop.f32.mrf.mxu0
    %v166 = vadd.f32 %v127, %v165
    %167 = vmatmul.f32.gmra.mxu0 %v137
    %v168 = vpop.f32.mrf.mxu0
    %v169 = vadd.f32 %v127, %v168
    %170 = vmatmul.f32.gmra.mxu0 %v140
    %v171 = vpop.f32.mrf.mxu0
    %v172 = vadd.f32 %v127, %v171
    %173 = vdwg.mxu0
    %v174 = vtanh.pop %v163
    %v175 = vtanh.pop %v166
    %v176 = vtanh.pop %v169
    %v177 = vtanh.pop %v172
    %v178 = vld [vmem:[%s6] sm:$0xff]
    %v179 = vld [vmem:[%s6 + $0x8] sm:$0xff]
    %v180 = vld [vmem:[%s6 + $0x10] sm:$0xff]
    %v181 = vld [vmem:[%s6 + $0x18] sm:$0xff]
    %v182 = vld [vmem:[%s7] sm:$0x1]
    %vm183 = vcmask 261120
    %v185 = vsel %vm183, %v174, 0
    %v188 = vsel %vm183, %v175, 0
    %v191 = vsel %vm183, %v176, 0
    %v194 = vsel %vm183, %v177, 0
    %196 = vmatpush.msra.mxu0 0.0
    %197 = vmatpush.msra.mxu0 0.0
    %198 = vmatpush.msra.mxu0 0.0
    %199 = vmatpush.msra.mxu0 0.0
    %200 = vmatpush.msra.mxu0 0.0
    %201 = vmatpush.msra.mxu0 0.0
    %202 = vmatpush.msra.mxu0 0.0
    %203 = vmatpush.msra.mxu0 0.0
    %204 = vmatpush.msra.mxu0 0.0
    %205 = vmatpush.msra.mxu0 0.0
    %206 = vmatpush.msra.mxu0 0.0
    %207 = vmatpush.msra.mxu0 0.0
    %208 = vmatpush.msra.mxu0 %v181
    %209 = vmatpush.msra.mxu0 %v180
    %210 = vmatpush.msra.mxu0 %v179
    %211 = vmatpush.msra.mxu0 %v178
    %212 = vmatmul.f32.gmra.mxu0 %v185
    %v213 = vpop.f32.mrf.mxu0
    %v214 = vadd.f32 0.0, %v213
    %215 = vmatmul.f32.gmra.mxu0 %v188
    %v216 = vpop.f32.mrf.mxu0
    %v217 = vadd.f32 0.0, %v216
    %218 = vmatmul.f32.gmra.mxu0 %v191
    %v219 = vpop.f32.mrf.mxu0
    %v220 = vadd.f32 0.0, %v219
    %221 = vmatmul.f32.gmra.mxu0 %v194
    %v222 = vpop.f32.mrf.mxu0
    %v223 = vadd.f32 0.0, %v222
    %224 = vdwg.mxu0
    %v226 = vperm.slane %v182, 0
    %v229 = vsel %vm93, %v223, 0
    %231 = vmatpush.msra.mxu0 0.0
    %232 = vmatpush.msra.mxu0 0.0
    %233 = vmatpush.msra.mxu0 0.0
    %234 = vmatpush.msra.mxu0 0.0
    %235 = vmatpush.msra.mxu0 0.0
    %236 = vmatpush.msra.mxu0 0.0
    %237 = vmatpush.msra.mxu0 0.0
    %238 = vmatpush.msra.mxu0 0.0
    %239 = vmatpush.msra.mxu0 0.0
    %240 = vmatpush.msra.mxu0 0.0
    %241 = vmatpush.msra.mxu0 0.0
    %242 = vmatpush.msra.mxu0 0.0
    %243 = vmatpush.msra.mxu0 %v229
    %244 = vmatpush.msra.mxu0 %v220
    %245 = vmatpush.msra.mxu0 %v217
    %246 = vmatpush.msra.mxu0 %v214
    %247 = vmatmul.f32.gmra.mxu0 %v131
    %v248 = vpop.f32.mrf.mxu0
    %v249 = vadd.f32 %v226, %v248
    %250 = vmatmul.f32.gmra.mxu0 %v134
    %v251 = vpop.f32.mrf.mxu0
    %v252 = vadd.f32 %v226, %v251
    %253 = vmatmul.f32.gmra.mxu0 %v137
    %v254 = vpop.f32.mrf.mxu0
    %v255 = vadd.f32 %v226, %v254
    %256 = vmatmul.f32.gmra.mxu0 %v140
    %v257 = vpop.f32.mrf.mxu0
    %v258 = vadd.f32 %v226, %v257
    %259 = vdwg.mxu0
    %v260 = vtanh.pop %v249
    %v261 = vtanh.pop %v252
    %v262 = vtanh.pop %v255
    %v263 = vtanh.pop %v258
    %v264 = vld [vmem:[%s8] sm:$0xff]
    %v265 = vld [vmem:[%s8 + $0x8] sm:$0xff]
    %v266 = vld [vmem:[%s8 + $0x10] sm:$0xff]
    %v267 = vld [vmem:[%s8 + $0x18] sm:$0xff]
    %v268 = vld [vmem:[%s9] sm:$0x1]
    %v270 = vsel %vm183, %v260, 0
    %v273 = vsel %vm183, %v261, 0
    %v276 = vsel %vm183, %v262, 0
    %v279 = vsel %vm183, %v263, 0
    %281 = vmatpush.msra.mxu0 0.0
    %282 = vmatpush.msra.mxu0 0.0
    %283 = vmatpush.msra.mxu0 0.0
    %284 = vmatpush.msra.mxu0 0.0
    %285 = vmatpush.msra.mxu0 0.0
    %286 = vmatpush.msra.mxu0 0.0
    %287 = vmatpush.msra.mxu0 0.0
    %288 = vmatpush.msra.mxu0 0.0
    %289 = vmatpush.msra.mxu0 0.0
    %290 = vmatpush.msra.mxu0 0.0
    %291 = vmatpush.msra.mxu0 0.0
    %292 = vmatpush.msra.mxu0 0.0
    %293 = vmatpush.msra.mxu0 %v267
    %294 = vmatpush.msra.mxu0 %v266
    %295 = vmatpush.msra.mxu0 %v265
    %296 = vmatpush.msra.mxu0 %v264
    %297 = vmatmul.f32.gmra.mxu0 %v270
    %v298 = vpop.f32.mrf.mxu0
    %v299 = vadd.f32 0.0, %v298
    %300 = vmatmul.f32.gmra.mxu0 %v273
    %v301 = vpop.f32.mrf.mxu0
    %v302 = vadd.f32 0.0, %v301
    %303 = vmatmul.f32.gmra.mxu0 %v276
    %v304 = vpop.f32.mrf.mxu0
    %v305 = vadd.f32 0.0, %v304
    %306 = vmatmul.f32.gmra.mxu0 %v279
    %v307 = vpop.f32.mrf.mxu0
    %v308 = vadd.f32 0.0, %v307
    %309 = vdwg.mxu0
    %v311 = vperm.slane %v268, 0
    %v314 = vsel %vm93, %v308, 0
    %316 = vmatpush.msra.mxu0 0.0
    %317 = vmatpush.msra.mxu0 0.0
    %318 = vmatpush.msra.mxu0 0.0
    %319 = vmatpush.msra.mxu0 0.0
    %320 = vmatpush.msra.mxu0 0.0
    %321 = vmatpush.msra.mxu0 0.0
    %322 = vmatpush.msra.mxu0 0.0
    %323 = vmatpush.msra.mxu0 0.0
    %324 = vmatpush.msra.mxu0 0.0
    %325 = vmatpush.msra.mxu0 0.0
    %326 = vmatpush.msra.mxu0 0.0
    %327 = vmatpush.msra.mxu0 0.0
    %328 = vmatpush.msra.mxu0 %v314
    %329 = vmatpush.msra.mxu0 %v305
    %330 = vmatpush.msra.mxu0 %v302
    %331 = vmatpush.msra.mxu0 %v299
    %332 = vmatmul.f32.gmra.mxu0 %v131
    %v333 = vpop.f32.mrf.mxu0
    %v334 = vadd.f32 %v311, %v333
    %335 = vmatmul.f32.gmra.mxu0 %v134
    %v336 = vpop.f32.mrf.mxu0
    %v337 = vadd.f32 %v311, %v336
    %338 = vmatmul.f32.gmra.mxu0 %v137
    %v339 = vpop.f32.mrf.mxu0
    %v340 = vadd.f32 %v311, %v339
    %341 = vmatmul.f32.gmra.mxu0 %v140
    %v342 = vpop.f32.mrf.mxu0
    %v343 = vadd.f32 %v311, %v342
    %344 = vdwg.mxu0
    %v345 = vtanh.pop %v334
    %v346 = vtanh.pop %v337
    %v347 = vtanh.pop %v340
    %v348 = vtanh.pop %v343
    %v349 = vld [vmem:[%s10] sm:$0xff]
    %v350 = vld [vmem:[%s10 + $0x8] sm:$0xff]
    %v351 = vld [vmem:[%s10 + $0x10] sm:$0xff]
    %v352 = vld [vmem:[%s10 + $0x18] sm:$0xff]
    %v353 = vld [vmem:[#allocation3] sm:$0x1]
    %v355 = vsel %vm183, %v345, 0
    %v358 = vsel %vm183, %v346, 0
    %v361 = vsel %vm183, %v347, 0
    %v364 = vsel %vm183, %v348, 0
    %366 = vmatpush.msra.mxu0 0.0
    %367 = vmatpush.msra.mxu0 0.0
    %368 = vmatpush.msra.mxu0 0.0
    %369 = vmatpush.msra.mxu0 0.0
    %370 = vmatpush.msra.mxu0 0.0
    %371 = vmatpush.msra.mxu0 0.0
    %372 = vmatpush.msra.mxu0 0.0
    %373 = vmatpush.msra.mxu0 0.0
    %374 = vmatpush.msra.mxu0 0.0
    %375 = vmatpush.msra.mxu0 0.0
    %376 = vmatpush.msra.mxu0 0.0
    %377 = vmatpush.msra.mxu0 0.0
    %378 = vmatpush.msra.mxu0 %v352
    %379 = vmatpush.msra.mxu0 %v351
    %380 = vmatpush.msra.mxu0 %v350
    %381 = vmatpush.msra.mxu0 %v349
    %382 = vmatmul.f32.gmra.mxu0 %v355
    %v383 = vpop.f32.mrf.mxu0
    %v384 = vadd.f32 0.0, %v383
    %385 = vmatmul.f32.gmra.mxu0 %v358
    %v386 = vpop.f32.mrf.mxu0
    %v387 = vadd.f32 0.0, %v386
    %388 = vmatmul.f32.gmra.mxu0 %v361
    %v389 = vpop.f32.mrf.mxu0
    %v390 = vadd.f32 0.0, %v389
    %391 = vmatmul.f32.gmra.mxu0 %v364
    %v392 = vpop.f32.mrf.mxu0
    %v393 = vadd.f32 0.0, %v392
    %394 = vdwg.mxu0
    %v396 = vperm.slane %v353, 0
    %v399 = vsel %vm93, %v393, 0
    %401 = vmatpush.msra.mxu0 0.0
    %402 = vmatpush.msra.mxu0 0.0
    %403 = vmatpush.msra.mxu0 0.0
    %404 = vmatpush.msra.mxu0 0.0
    %405 = vmatpush.msra.mxu0 0.0
    %406 = vmatpush.msra.mxu0 0.0
    %407 = vmatpush.msra.mxu0 0.0
    %408 = vmatpush.msra.mxu0 0.0
    %409 = vmatpush.msra.mxu0 0.0
    %410 = vmatpush.msra.mxu0 0.0
    %411 = vmatpush.msra.mxu0 0.0
    %412 = vmatpush.msra.mxu0 0.0
    %413 = vmatpush.msra.mxu0 %v399
    %414 = vmatpush.msra.mxu0 %v390
    %415 = vmatpush.msra.mxu0 %v387
    %416 = vmatpush.msra.mxu0 %v384
    %417 = vmatmul.f32.gmra.mxu0 %v131
    %v418 = vpop.f32.mrf.mxu0
    %v419 = vadd.f32 %v396, %v418
    %420 = vmatmul.f32.gmra.mxu0 %v134
    %v421 = vpop.f32.mrf.mxu0
    %v422 = vadd.f32 %v396, %v421
    %423 = vmatmul.f32.gmra.mxu0 %v137
    %v424 = vpop.f32.mrf.mxu0
    %v425 = vadd.f32 %v396, %v424
    %426 = vmatmul.f32.gmra.mxu0 %v140
    %v427 = vpop.f32.mrf.mxu0
    %v428 = vadd.f32 %v396, %v427
    %429 = vdwg.mxu0
    %v430 = vtanh.pop %v419
    %v431 = vtanh.pop %v422
    %v432 = vtanh.pop %v425
    %v433 = vtanh.pop %v428
    %434 = vrot.lane.b32.xlu0 %v260, 32
    %v435 = vpop.permute.xlu0 %434
    %436 = vrot.lane.b32.xlu0 %v261, 32
    %v437 = vpop.permute.xlu0 %436
    %438 = vrot.lane.b32.xlu0 %v262, 32
    %v439 = vpop.permute.xlu0 %438
    %440 = vrot.lane.b32.xlu0 %v263, 32
    %v441 = vpop.permute.xlu0 %440
    %446 = vrot.lane.b32.xlu0 %v345, 64
    %v447 = vpop.permute.xlu0 %446
    %448 = vrot.lane.b32.xlu0 %v346, 64
    %v449 = vpop.permute.xlu0 %448
    %450 = vrot.lane.b32.xlu0 %v347, 64
    %v451 = vpop.permute.xlu0 %450
    %452 = vrot.lane.b32.xlu0 %v348, 64
    %v453 = vpop.permute.xlu0 %452
    %462 = vrot.lane.b32.xlu0 %v430, 96
    %v463 = vpop.permute.xlu0 %462
    %464 = vrot.lane.b32.xlu0 %v431, 96
    %v465 = vpop.permute.xlu0 %464
    %466 = vrot.lane.b32.xlu0 %v432, 96
    %v467 = vpop.permute.xlu0 %466
    %468 = vrot.lane.b32.xlu0 %v433, 96
    %v469 = vpop.permute.xlu0 %468
    %v474 = vsel %vm183, %v174, %v435
    %v475 = vsel %vm183, %v175, %v437
    %v476 = vsel %vm183, %v176, %v439
    %v477 = vsel %vm183, %v177, %v441
    %vm478 = vcmask 523264
    %v479 = vsel %vm478, %v474, %v447
    %v480 = vsel %vm478, %v475, %v449
    %v481 = vsel %vm478, %v476, %v451
    %v482 = vsel %vm478, %v477, %v453
    %vm483 = vcmask 785408
    %v484 = vsel %vm483, %v479, %v463
    %v485 = vsel %vm483, %v480, %v465
    %v486 = vsel %vm483, %v481, %v467
    %v487 = vsel %vm483, %v482, %v469
    %vm488 = vcmask 793600
    %v489 = vsel %vm488, %v484, 0.0
    %v490 = vsel %vm488, %v485, 0.0
    %v491 = vsel %vm488, %v486, 0.0
    %v492 = vsel %vm488, %v487, 0.0
    %493 = vst [vmem:[%s16] sm:$0xff] %v489
    %494 = vst [vmem:[%s16 + $0x8] sm:$0xff] %v490
    %495 = vst [vmem:[%s16 + $0x10] sm:$0xff] %v491
    %496 = vst [vmem:[%s16 + $0x18] sm:$0xf] %v492
    %v497 = vld [vmem:[%s3] sm:$0xff]
    %v498 = vld [vmem:[%s3 + $0x8] sm:$0xff]
    %v499 = vld [vmem:[%s3 + $0x10] sm:$0xff]
    %v500 = vld [vmem:[%s3 + $0x18] sm:$0xf]
    %v501 = vld [vmem:[%s12] sm:$0xff]
    %v502 = vld [vmem:[%s12 + $0x8] sm:$0xff]
    %v503 = vld [vmem:[%s12 + $0x10] sm:$0xff]
    %v504 = vld [vmem:[%s12 + $0x18] sm:$0xff]
    %v506 = vsel %vm183, %v497, 0
    %v509 = vsel %vm183, %v498, 0
    %v512 = vsel %vm183, %v499, 0
    %v515 = vsel %vm183, %v500, 0
    %517 = vmatpush.msra.mxu0 0.0
    %518 = vmatpush.msra.mxu0 0.0
    %519 = vmatpush.msra.mxu0 0.0
    %520 = vmatpush.msra.mxu0 0.0
    %521 = vmatpush.msra.mxu0 0.0
    %522 = vmatpush.msra.mxu0 0.0
    %523 = vmatpush.msra.mxu0 0.0
    %524 = vmatpush.msra.mxu0 0.0
    %525 = vmatpush.msra.mxu0 0.0
    %526 = vmatpush.msra.mxu0 0.0
    %527 = vmatpush.msra.mxu0 0.0
    %528 = vmatpush.msra.mxu0 0.0
    %529 = vmatpush.msra.mxu0 %v504
    %530 = vmatpush.msra.mxu0 %v503
    %531 = vmatpush.msra.mxu0 %v502
    %532 = vmatpush.msra.mxu0 %v501
    %533 = vmatmul.f32.gmra.mxu0 %v506
    %v534 = vpop.f32.mrf.mxu0
    %v535 = vadd.f32 0.0, %v534
    %536 = vmatmul.f32.gmra.mxu0 %v509
    %v537 = vpop.f32.mrf.mxu0
    %v538 = vadd.f32 0.0, %v537
    %539 = vmatmul.f32.gmra.mxu0 %v512
    %v540 = vpop.f32.mrf.mxu0
    %v541 = vadd.f32 0.0, %v540
    %542 = vmatmul.f32.gmra.mxu0 %v515
    %v543 = vpop.f32.mrf.mxu0
    %v544 = vadd.f32 0.0, %v543
    %545 = vdwg.mxu0
    %v546 = vld [vmem:[%s13] sm:$0x1]
    %v548 = vperm.slane %v546, 0
    %v551 = vsel %vm93, %v544, 0
    %553 = vmatpush.msra.mxu0 0.0
    %554 = vmatpush.msra.mxu0 0.0
    %555 = vmatpush.msra.mxu0 0.0
    %556 = vmatpush.msra.mxu0 0.0
    %557 = vmatpush.msra.mxu0 0.0
    %558 = vmatpush.msra.mxu0 0.0
    %559 = vmatpush.msra.mxu0 0.0
    %560 = vmatpush.msra.mxu0 0.0
    %561 = vmatpush.msra.mxu0 0.0
    %562 = vmatpush.msra.mxu0 0.0
    %563 = vmatpush.msra.mxu0 0.0
    %564 = vmatpush.msra.mxu0 0.0
    %565 = vmatpush.msra.mxu0 %v551
    %566 = vmatpush.msra.mxu0 %v541
    %567 = vmatpush.msra.mxu0 %v538
    %568 = vmatpush.msra.mxu0 %v535
    %569 = vmatmul.f32.gmra.mxu0 %v131
    %v570 = vpop.f32.mrf.mxu0
    %v571 = vadd.f32 %v548, %v570
    %572 = vmatmul.f32.gmra.mxu0 %v134
    %v573 = vpop.f32.mrf.mxu0
    %v574 = vadd.f32 %v548, %v573
    %575 = vmatmul.f32.gmra.mxu0 %v137
    %v576 = vpop.f32.mrf.mxu0
    %v577 = vadd.f32 %v548, %v576
    %578 = vmatmul.f32.gmra.mxu0 %v140
    %v579 = vpop.f32.mrf.mxu0
    %v580 = vadd.f32 %v548, %v579
    %581 = vdwg.mxu0
    %v582 = vmax.f32 %v571, 0.0
    %v583 = vmax.f32 %v574, 0.0
    %v584 = vmax.f32 %v577, 0.0
    %v585 = vmax.f32 %v580, 0.0
    %v586 = vld [vmem:[%s14] sm:$0xff]
    %v587 = vld [vmem:[%s14 + $0x8] sm:$0xff]
    %v588 = vld [vmem:[%s14 + $0x10] sm:$0xff]
    %v589 = vld [vmem:[%s14 + $0x18] sm:$0xff]
    %v590 = vld [vmem:[%s14 + $0x20] sm:$0xff]
    %v591 = vld [vmem:[%s14 + $0x28] sm:$0xff]
    %v592 = vld [vmem:[%s14 + $0x30] sm:$0xff]
    %v593 = vld [vmem:[%s14 + $0x38] sm:$0xff]
    %v595 = vsel %vm478, %v582, 0
    %v598 = vsel %vm478, %v583, 0
    %v601 = vsel %vm478, %v584, 0
    %v604 = vsel %vm478, %v585, 0
    %606 = vmatpush.msra.mxu0 0.0
    %607 = vmatpush.msra.mxu0 0.0
    %608 = vmatpush.msra.mxu0 0.0
    %609 = vmatpush.msra.mxu0 0.0
    %610 = vmatpush.msra.mxu0 0.0
    %611 = vmatpush.msra.mxu0 0.0
    %612 = vmatpush.msra.mxu0 0.0
    %613 = vmatpush.msra.mxu0 0.0
    %614 = vmatpush.msra.mxu0 %v593
    %615 = vmatpush.msra.mxu0 %v592
    %616 = vmatpush.msra.mxu0 %v591
    %617 = vmatpush.msra.mxu0 %v590
    %618 = vmatpush.msra.mxu0 %v589
    %619 = vmatpush.msra.mxu0 %v588
    %620 = vmatpush.msra.mxu0 %v587
    %621 = vmatpush.msra.mxu0 %v586
    %622 = vmatmul.f32.gmra.mxu0 %v595
    %v623 = vpop.f32.mrf.mxu0
    %v624 = vadd.f32 0.0, %v623
    %625 = vmatmul.f32.gmra.mxu0 %v598
    %v626 = vpop.f32.mrf.mxu0
    %v627 = vadd.f32 0.0, %v626
    %628 = vmatmul.f32.gmra.mxu0 %v601
    %v629 = vpop.f32.mrf.mxu0
    %v630 = vadd.f32 0.0, %v629
    %631 = vmatmul.f32.gmra.mxu0 %v604
    %v632 = vpop.f32.mrf.mxu0
    %v633 = vadd.f32 0.0, %v632
    %634 = vdwg.mxu0
    %v635 = vld [vmem:[%s15] sm:$0x1]
    %v637 = vperm.slane %v635, 0
    %v640 = vsel %vm93, %v633, 0
    %642 = vmatpush.msra.mxu0 0.0
    %643 = vmatpush.msra.mxu0 0.0
    %644 = vmatpush.msra.mxu0 0.0
    %645 = vmatpush.msra.mxu0 0.0
    %646 = vmatpush.msra.mxu0 0.0
    %647 = vmatpush.msra.mxu0 0.0
    %648 = vmatpush.msra.mxu0 0.0
    %649 = vmatpush.msra.mxu0 0.0
    %650 = vmatpush.msra.mxu0 0.0
    %651 = vmatpush.msra.mxu0 0.0
    %652 = vmatpush.msra.mxu0 0.0
    %653 = vmatpush.msra.mxu0 0.0
    %654 = vmatpush.msra.mxu0 %v640
    %655 = vmatpush.msra.mxu0 %v630
    %656 = vmatpush.msra.mxu0 %v627
    %657 = vmatpush.msra.mxu0 %v624
    %658 = vmatmul.f32.gmra.mxu0 %v131
    %v659 = vpop.f32.mrf.mxu0
    %v660 = vadd.f32 %v637, %v659
    %661 = vmatmul.f32.gmra.mxu0 %v134
    %v662 = vpop.f32.mrf.mxu0
    %v663 = vadd.f32 %v637, %v662
    %664 = vmatmul.f32.gmra.mxu0 %v137
    %v665 = vpop.f32.mrf.mxu0
    %v666 = vadd.f32 %v637, %v665
    %667 = vmatmul.f32.gmra.mxu0 %v140
    %v668 = vpop.f32.mrf.mxu0
    %v669 = vadd.f32 %v637, %v668
    %670 = vdwg.mxu0
    %vm671 = vcmask 64512
    %672 = vst.msk [vmem:[#allocation2] sm:$0xff] %vm671, %v660
    %673 = vst.msk [vmem:[#allocation2 + $0x8] sm:$0xff] %vm671, %v663
    %674 = vst.msk [vmem:[#allocation2 + $0x10] sm:$0xff] %vm671, %v666
    %vm675 = vcmask 60416
    %676 = vst.msk [vmem:[#allocation2 + $0x18] sm:$0xf] %vm675, %v669
    %s677 = sld [smem:[#allocation4]]
    %s678 = sld [smem:[#allocation4 + $0x1]]
    %s679 = scalar_lea.vmem [#allocation2], %s677
    %v680 = vld [vmem:[%s679] sm:$0x1]
    %s681 = scalar_lea.vmem [#allocation2], %s678
    %v682 = vld [vmem:[%s681] sm:$0x1]
    %v683 = vadd.f32 %v680, %v682
    %s684 = sld [smem:[#allocation4 + $0x2]]
    %s685 = sld [smem:[#allocation4 + $0x3]]
    %s686 = scalar_lea.vmem [#allocation2], %s684
    %v687 = vld [vmem:[%s686] sm:$0x1]
    %s688 = scalar_lea.vmem [#allocation2], %s685
    %v689 = vld [vmem:[%s688] sm:$0x1]
    %v690 = vadd.f32 %v687, %v689
    %v692 = vrot.slane %v690, 7
    %vm694 = vcmask 1040384
    %v695 = vsel %vm694, %v683, %v692
    %vm696 = vcmask 58368
    %697 = vst.msk [vmem:[%s17] sm:$0x3] %vm696, %v695
    // Predicated region
    $region70: #{_lambda_.2} parent=1 // pred_check
      _
    $region71: #{_lambda_.2} parent=1 // pred_check_branch
      %699 = sbr.rel (0) target = $region73
    $region72: #{_lambda_.2} parent=1 // pred_region
      _
    $region73: #{_lambda_.2} parent=1 // pred_fallthru
      _
    // Predicated region
    $region74: #{_lambda_.2} parent=1 // pred_check
      _
    $region75: #{_lambda_.2} parent=1 // pred_check_branch
      %701 = sbr.rel (0) target = $region77
    $region76: #{_lambda_.2} parent=1 // pred_region
      _
    $region77: #{_lambda_.2} parent=1 // pred_fallthru
      _
    // Predicated region
    $region78: #{_lambda_.2} parent=1 // pred_check
      _
    $region79: #{_lambda_.2} parent=1 // pred_check_branch
      %703 = sbr.rel (0) target = $region81
    $region80: #{_lambda_.2} parent=1 // pred_region
      _
    $region81: #{_lambda_.2} parent=1 // pred_fallthru
      _
    // Predicated region
    $region82: #{_lambda_.2} parent=1 // pred_check
      _
    $region83: #{_lambda_.2} parent=1 // pred_check_branch
      %705 = sbr.rel (0) target = $region85
    $region84: #{_lambda_.2} parent=1 // pred_region
      _
    $region85: #{_lambda_.2} parent=1 // pred_fallthru
      _
    %706 = vsyncpa [#allocation5], 1

</llo_original>
